<compile_context>
chip_gen: v7x
topology: tpu7x:2x2x1
jax: 0.10.0
libtpu: 0.0.40
codegen_flags: <defaults>
</compile_context>

<pallas_src>
import jax
import jax.numpy as jnp
from jax import lax
from jax.experimental import pallas as pl
from jax.experimental.pallas import tpu as pltpu

DIMS = (6, 12, 48, 96, 64, 2)
NLAYERS = len(DIMS) - 1
MAX_OUT = max(DIMS[1:])    # 96
MAX_IN = max(DIMS[:-1])    # 96


def init_params(key):
    """PyTorch nn.Linear-style init (U[-1/sqrt(fan_in), +1/sqrt(fan_in)]);
    weights kept in native (out, in) orientation, f32."""
    params = []
    for l in range(NLAYERS):
        fan_in, fan_out = DIMS[l], DIMS[l + 1]
        key, kw, kb = jax.random.split(key, 3)
        bound = 1.0 / (fan_in ** 0.5)
        w = jax.random.uniform(kw, (fan_out, fan_in), jnp.float32, -bound, bound)
        b = jax.random.uniform(kb, (fan_out,), jnp.float32, -bound, bound)
        params.append((w, b))
    return params


def pack_params(params):
    """Pack the 5 weights into one zero-padded bf16 slab and biases into one f32 slab."""
    w_slab = jnp.zeros((NLAYERS, MAX_OUT, MAX_IN), jnp.bfloat16)
    b_slab = jnp.zeros((NLAYERS, MAX_OUT, 1), jnp.float32)
    for l, (w, b) in enumerate(params):
        o, i = w.shape
        w_slab = w_slab.at[l, :o, :i].set(w.astype(jnp.bfloat16))
        b_slab = b_slab.at[l, :o, 0].set(b.astype(jnp.float32))
    return w_slab, b_slab


def _pick_tiles(batch, tb_cap):
    """Choose the lane-dim batch tile TB (multiple of 128/256, >=2 grid steps when
    possible for v7x's 2 TCs) and the in-kernel sub-block width TBS."""
    half = -(-batch // 2)
    tb = min(tb_cap, max(128, half))
    if tb > 128:
        tb = ((tb + 255) // 256) * 256
    else:
        tb = 128
    tbs = 256 if tb % 256 == 0 else 128
    return tb, tbs


def mlp_forward(x, w_slab, b_slab, *, tb_cap=2048):
    """x: (B, 6) float32 -> (B, 2) float32."""
    B, in_dim = x.shape
    assert in_dim == DIMS[0]
    out_dim = DIMS[-1]

    TB, TBS = _pick_tiles(B, tb_cap)
    Bp = ((B + TB - 1) // TB) * TB
    nsub = TB // TBS

    xt = x.T                                       # (6, B): batch on lanes
    if Bp != B:
        xt = jnp.pad(xt, ((0, 0), (0, Bp - B)))

    def kernel(x_ref, w_ref, b_ref, o_ref):
        # Weights / biases are VMEM-resident (constant index_map); static sub-window
        # loads once per grid step, reused by every sub-block iteration below.
        ws = [w_ref[l, :DIMS[l + 1], :DIMS[l]] for l in range(NLAYERS)]   # bf16
        bs = [b_ref[l, :DIMS[l + 1], :] for l in range(NLAYERS)]          # f32 (out, 1)

        def body(s, carry):
            start = pl.multiple_of(s * TBS, TBS)
            h = x_ref[:, pl.ds(start, TBS)].astype(jnp.bfloat16)          # (6, TBS)
            y = None
            for l in range(NLAYERS):
                # MXU matmul with f32 accumulation; bias-add / ReLU in f32 on the VPU.
                y = jnp.dot(ws[l], h, preferred_element_type=jnp.float32) + bs[l]
                if l < NLAYERS - 1:
                    h = jnp.maximum(y, 0.0).astype(jnp.bfloat16)
            o_ref[:, pl.ds(start, TBS)] = y.astype(o_ref.dtype)           # lane-dense store
            return carry

        lax.fori_loop(0, nsub, body, 0, unroll=True)

    flops_per_col = 2 * sum(DIMS[l] * DIMS[l + 1] for l in range(NLAYERS))
    cost = pl.CostEstimate(
        flops=flops_per_col * Bp,
        transcendentals=0,
        bytes_accessed=(xt.size * xt.dtype.itemsize
                        + Bp * out_dim * 4
                        + w_slab.size * w_slab.dtype.itemsize
                        + b_slab.size * b_slab.dtype.itemsize))

    out_t = pl.pallas_call(
        kernel,
        out_shape=jax.ShapeDtypeStruct((out_dim, Bp), jnp.float32),
        grid=(Bp // TB,),
        in_specs=[
            pl.BlockSpec((DIMS[0], TB), lambda i: (0, i)),      # x tile: pipelined
            pl.BlockSpec(w_slab.shape, lambda i: (0, 0, 0)),    # weight slab: resident
            pl.BlockSpec(b_slab.shape, lambda i: (0, 0, 0)),    # bias slab: resident
        ],
        out_specs=pl.BlockSpec((out_dim, TB), lambda i: (0, i)),
        compiler_params=pltpu.CompilerParams(
            dimension_semantics=("parallel",)),    # shard batch tiles over v7x's 2 TCs
        cost_estimate=cost,
    )(xt, w_slab, b_slab)

    out_t = out_t[:, :B] if Bp != B else out_t
    return out_t.T                                 # back to (B, 2)


def reference_forward_f32(x, params):
    h = x
    for i, (w, b) in enumerate(params):
        h = h @ w.T + b
        if i < len(params) - 1:
            h = jnp.maximum(h, 0.0)
    return h


def reference_forward_mixed(x, params):
    """Same bf16-input / f32-accumulate math as the kernel (tight comparison)."""
    h = x
    for i, (w, b) in enumerate(params):
        y = jnp.dot(h.astype(jnp.bfloat16), w.astype(jnp.bfloat16).T,
                    preferred_element_type=jnp.float32) + b
        h = jnp.maximum(y, 0.0) if i < len(params) - 1 else y
    return h


if __name__ == "__main__":
    key = jax.random.PRNGKey(0)
    kx, kp = jax.random.split(key)
    params = init_params(kp)
    w_slab, b_slab = pack_params(params)

    B = 2048                     # -> 2 grid steps of TB=1024, 4 unrolled 256-lane sub-blocks
    x = jax.random.normal(kx, (B, DIMS[0]), jnp.float32)

    out = jax.block_until_ready(mlp_forward(x, w_slab, b_slab))

    ref_mixed = reference_forward_mixed(x, params)
    ref_f32 = reference_forward_f32(x, params)

    assert out.shape == (B, DIMS[-1]), out.shape
    assert jnp.allclose(out, ref_mixed, atol=1e-3, rtol=1e-3), \
        "mismatch vs mixed-precision reference"
    assert jnp.allclose(out, ref_f32, atol=5e-2, rtol=5e-2), \
        "mismatch vs f32 reference"
    print("KERNEL_OK")
</pallas_src>

<mosaic_0001>
module attributes {stable_mosaic.version = 11 : i64} {
  func.func @kernel(%arg0: i32, %arg1: memref<6x1024xf32, #tpu.memory_space<vmem>>, %arg2: memref<5x96x96xbf16, #tpu.memory_space<vmem>>, %arg3: memref<5x96x1xf32, #tpu.memory_space<vmem>>, %arg4: memref<2x1024xf32, #tpu.memory_space<vmem>>) attributes {dimension_semantics = [#tpu.dimension_semantics<parallel>], iteration_bounds = array<i64: 2>, scalar_prefetch = 0 : i64, scratch_operands = 0 : i64, tpu.core_type = #tpu.core_type<tc>, window_params = [{transform_indices = @transform_0, window_bounds = array<i64: 6, 1024>}, {pipeline_mode = #tpu.pipeline_mode<synchronous>, transform_indices = @transform_1, window_bounds = array<i64: 5, 96, 96>}, {pipeline_mode = #tpu.pipeline_mode<synchronous>, transform_indices = @transform_2, window_bounds = array<i64: 5, 96, 1>}, {transform_indices = @transform_3, window_bounds = array<i64: 2, 1024>}]} {
    %c0 = arith.constant 0 : index
    %c0_0 = arith.constant 0 : index
    %c0_1 = arith.constant 0 : index
    %0 = vector.load %arg2[%c0, %c0_0, %c0_1] : memref<5x96x96xbf16, #tpu.memory_space<vmem>>, vector<1x12x6xbf16>
    %1 = vector.shape_cast %0 : vector<1x12x6xbf16> to vector<12x6xbf16>
    %c1 = arith.constant 1 : index
    %c0_2 = arith.constant 0 : index
    %c0_3 = arith.constant 0 : index
    %2 = vector.load %arg2[%c1, %c0_2, %c0_3] : memref<5x96x96xbf16, #tpu.memory_space<vmem>>, vector<1x48x12xbf16>
    %3 = vector.shape_cast %2 : vector<1x48x12xbf16> to vector<48x12xbf16>
    %c2 = arith.constant 2 : index
    %c0_4 = arith.constant 0 : index
    %c0_5 = arith.constant 0 : index
    %4 = vector.load %arg2[%c2, %c0_4, %c0_5] : memref<5x96x96xbf16, #tpu.memory_space<vmem>>, vector<1x96x48xbf16>
    %5 = vector.shape_cast %4 : vector<1x96x48xbf16> to vector<96x48xbf16>
    %c3 = arith.constant 3 : index
    %c0_6 = arith.constant 0 : index
    %c0_7 = arith.constant 0 : index
    %6 = vector.load %arg2[%c3, %c0_6, %c0_7] : memref<5x96x96xbf16, #tpu.memory_space<vmem>>, vector<1x64x96xbf16>
    %7 = vector.shape_cast %6 : vector<1x64x96xbf16> to vector<64x96xbf16>
    %c4 = arith.constant 4 : index
    %c0_8 = arith.constant 0 : index
    %c0_9 = arith.constant 0 : index
    %8 = vector.load %arg2[%c4, %c0_8, %c0_9] : memref<5x96x96xbf16, #tpu.memory_space<vmem>>, vector<1x2x64xbf16>
    %9 = vector.shape_cast %8 : vector<1x2x64xbf16> to vector<2x64xbf16>
    %c0_10 = arith.constant 0 : index
    %c0_11 = arith.constant 0 : index
    %c0_12 = arith.constant 0 : index
    %10 = vector.load %arg3[%c0_10, %c0_11, %c0_12] : memref<5x96x1xf32, #tpu.memory_space<vmem>>, vector<1x12x1xf32>
    %11 = vector.shape_cast %10 : vector<1x12x1xf32> to vector<12x1xf32>
    %c1_13 = arith.constant 1 : index
    %c0_14 = arith.constant 0 : index
    %c0_15 = arith.constant 0 : index
    %12 = vector.load %arg3[%c1_13, %c0_14, %c0_15] : memref<5x96x1xf32, #tpu.memory_space<vmem>>, vector<1x48x1xf32>
    %13 = vector.shape_cast %12 : vector<1x48x1xf32> to vector<48x1xf32>
    %c2_16 = arith.constant 2 : index
    %c0_17 = arith.constant 0 : index
    %c0_18 = arith.constant 0 : index
    %14 = vector.load %arg3[%c2_16, %c0_17, %c0_18] : memref<5x96x1xf32, #tpu.memory_space<vmem>>, vector<1x96x1xf32>
    %15 = vector.shape_cast %14 : vector<1x96x1xf32> to vector<96x1xf32>
    %c3_19 = arith.constant 3 : index
    %c0_20 = arith.constant 0 : index
    %c0_21 = arith.constant 0 : index
    %16 = vector.load %arg3[%c3_19, %c0_20, %c0_21] : memref<5x96x1xf32, #tpu.memory_space<vmem>>, vector<1x64x1xf32>
    %17 = vector.shape_cast %16 : vector<1x64x1xf32> to vector<64x1xf32>
    %c4_22 = arith.constant 4 : index
    %c0_23 = arith.constant 0 : index
    %c0_24 = arith.constant 0 : index
    %18 = vector.load %arg3[%c4_22, %c0_23, %c0_24] : memref<5x96x1xf32, #tpu.memory_space<vmem>>, vector<1x2x1xf32>
    %19 = vector.shape_cast %18 : vector<1x2x1xf32> to vector<2x1xf32>
    %c0_i32 = arith.constant 0 : i32
    %c256_i32 = arith.constant 256 : i32
    %20 = arith.muli %c0_i32, %c256_i32 : i32
    %21 = tpu.assume_multiple %20, 256 : i32
    %c0_25 = arith.constant 0 : index
    %22 = arith.index_cast %21 : i32 to index
    %23 = vector.load %arg1[%c0_25, %22] : memref<6x1024xf32, #tpu.memory_space<vmem>>, vector<6x256xf32>
    %24 = arith.truncf %23 : vector<6x256xf32> to vector<6x256xbf16>
    %cst = arith.constant dense<0.000000e+00> : vector<12x256xf32>
    %25 = tpu.matmul %1, %24, %cst {dimension_numbers = #tpu.dot_dimension_numbers<[1], [0], [0], [1], [0, 0, 1, 1], [], []>} : vector<12x6xbf16>, vector<6x256xbf16>, vector<12x256xf32> -> vector<12x256xf32>
    %26 = vector.broadcast %11 : vector<12x1xf32> to vector<12x256xf32>
    %27 = arith.addf %25, %26 : vector<12x256xf32>
    %cst_26 = arith.constant 0.000000e+00 : f32
    %28 = vector.broadcast %cst_26 : f32 to vector<12x256xf32>
    %29 = arith.maximumf %27, %28 : vector<12x256xf32>
    %30 = arith.truncf %29 : vector<12x256xf32> to vector<12x256xbf16>
    %cst_27 = arith.constant dense<0.000000e+00> : vector<48x256xf32>
    %31 = tpu.matmul %3, %30, %cst_27 {dimension_numbers = #tpu.dot_dimension_numbers<[1], [0], [0], [1], [0, 0, 1, 1], [], []>} : vector<48x12xbf16>, vector<12x256xbf16>, vector<48x256xf32> -> vector<48x256xf32>
    %32 = vector.broadcast %13 : vector<48x1xf32> to vector<48x256xf32>
    %33 = arith.addf %31, %32 : vector<48x256xf32>
    %cst_28 = arith.constant 0.000000e+00 : f32
    %34 = vector.broadcast %cst_28 : f32 to vector<48x256xf32>
    %35 = arith.maximumf %33, %34 : vector<48x256xf32>
    %36 = arith.truncf %35 : vector<48x256xf32> to vector<48x256xbf16>
    %cst_29 = arith.constant dense<0.000000e+00> : vector<96x256xf32>
    %37 = tpu.matmul %5, %36, %cst_29 {dimension_numbers = #tpu.dot_dimension_numbers<[1], [0], [0], [1], [0, 0, 1, 1], [], []>} : vector<96x48xbf16>, vector<48x256xbf16>, vector<96x256xf32> -> vector<96x256xf32>
    %38 = vector.broadcast %15 : vector<96x1xf32> to vector<96x256xf32>
    %39 = arith.addf %37, %38 : vector<96x256xf32>
    %cst_30 = arith.constant 0.000000e+00 : f32
    %40 = vector.broadcast %cst_30 : f32 to vector<96x256xf32>
    %41 = arith.maximumf %39, %40 : vector<96x256xf32>
    %42 = arith.truncf %41 : vector<96x256xf32> to vector<96x256xbf16>
    %cst_31 = arith.constant dense<0.000000e+00> : vector<64x256xf32>
    %43 = tpu.matmul %7, %42, %cst_31 {dimension_numbers = #tpu.dot_dimension_numbers<[1], [0], [0], [1], [0, 0, 1, 1], [], []>} : vector<64x96xbf16>, vector<96x256xbf16>, vector<64x256xf32> -> vector<64x256xf32>
    %44 = vector.broadcast %17 : vector<64x1xf32> to vector<64x256xf32>
    %45 = arith.addf %43, %44 : vector<64x256xf32>
    %cst_32 = arith.constant 0.000000e+00 : f32
    %46 = vector.broadcast %cst_32 : f32 to vector<64x256xf32>
    %47 = arith.maximumf %45, %46 : vector<64x256xf32>
    %48 = arith.truncf %47 : vector<64x256xf32> to vector<64x256xbf16>
    %cst_33 = arith.constant dense<0.000000e+00> : vector<2x256xf32>
    %49 = tpu.matmul %9, %48, %cst_33 {dimension_numbers = #tpu.dot_dimension_numbers<[1], [0], [0], [1], [0, 0, 1, 1], [], []>} : vector<2x64xbf16>, vector<64x256xbf16>, vector<2x256xf32> -> vector<2x256xf32>
    %50 = vector.broadcast %19 : vector<2x1xf32> to vector<2x256xf32>
    %51 = arith.addf %49, %50 : vector<2x256xf32>
    %c0_34 = arith.constant 0 : index
    %52 = arith.index_cast %21 : i32 to index
    %53 = vector.load %arg4[%c0_34, %52] : memref<2x1024xf32, #tpu.memory_space<vmem>>, vector<2x256xf32>
    tpu.vector_store %arg4[%c0_34, %52], %51 {strides = array<i32>} : memref<2x1024xf32, #tpu.memory_space<vmem>>, vector<2x256xf32>,
    %c1_i32 = arith.constant 1 : i32
    %c256_i32_35 = arith.constant 256 : i32
    %54 = arith.muli %c1_i32, %c256_i32_35 : i32
    %55 = tpu.assume_multiple %54, 256 : i32
    %c0_36 = arith.constant 0 : index
    %56 = arith.index_cast %55 : i32 to index
    %57 = vector.load %arg1[%c0_36, %56] : memref<6x1024xf32, #tpu.memory_space<vmem>>, vector<6x256xf32>
    %58 = arith.truncf %57 : vector<6x256xf32> to vector<6x256xbf16>
    %cst_37 = arith.constant dense<0.000000e+00> : vector<12x256xf32>
    %59 = tpu.matmul %1, %58, %cst_37 {dimension_numbers = #tpu.dot_dimension_numbers<[1], [0], [0], [1], [0, 0, 1, 1], [], []>} : vector<12x6xbf16>, vector<6x256xbf16>, vector<12x256xf32> -> vector<12x256xf32>
    %60 = vector.broadcast %11 : vector<12x1xf32> to vector<12x256xf32>
    %61 = arith.addf %59, %60 : vector<12x256xf32>
    %cst_38 = arith.constant 0.000000e+00 : f32
    %62 = vector.broadcast %cst_38 : f32 to vector<12x256xf32>
    %63 = arith.maximumf %61, %62 : vector<12x256xf32>
    %64 = arith.truncf %63 : vector<12x256xf32> to vector<12x256xbf16>
    %cst_39 = arith.constant dense<0.000000e+00> : vector<48x256xf32>
    %65 = tpu.matmul %3, %64, %cst_39 {dimension_numbers = #tpu.dot_dimension_numbers<[1], [0], [0], [1], [0, 0, 1, 1], [], []>} : vector<48x12xbf16>, vector<12x256xbf16>, vector<48x256xf32> -> vector<48x256xf32>
    %66 = vector.broadcast %13 : vector<48x1xf32> to vector<48x256xf32>
    %67 = arith.addf %65, %66 : vector<48x256xf32>
    %cst_40 = arith.constant 0.000000e+00 : f32
    %68 = vector.broadcast %cst_40 : f32 to vector<48x256xf32>
    %69 = arith.maximumf %67, %68 : vector<48x256xf32>
    %70 = arith.truncf %69 : vector<48x256xf32> to vector<48x256xbf16>
    %cst_41 = arith.constant dense<0.000000e+00> : vector<96x256xf32>
    %71 = tpu.matmul %5, %70, %cst_41 {dimension_numbers = #tpu.dot_dimension_numbers<[1], [0], [0], [1], [0, 0, 1, 1], [], []>} : vector<96x48xbf16>, vector<48x256xbf16>, vector<96x256xf32> -> vector<96x256xf32>
    %72 = vector.broadcast %15 : vector<96x1xf32> to vector<96x256xf32>
    %73 = arith.addf %71, %72 : vector<96x256xf32>
    %cst_42 = arith.constant 0.000000e+00 : f32
    %74 = vector.broadcast %cst_42 : f32 to vector<96x256xf32>
    %75 = arith.maximumf %73, %74 : vector<96x256xf32>
    %76 = arith.truncf %75 : vector<96x256xf32> to vector<96x256xbf16>
    %cst_43 = arith.constant dense<0.000000e+00> : vector<64x256xf32>
    %77 = tpu.matmul %7, %76, %cst_43 {dimension_numbers = #tpu.dot_dimension_numbers<[1], [0], [0], [1], [0, 0, 1, 1], [], []>} : vector<64x96xbf16>, vector<96x256xbf16>, vector<64x256xf32> -> vector<64x256xf32>
    %78 = vector.broadcast %17 : vector<64x1xf32> to vector<64x256xf32>
    %79 = arith.addf %77, %78 : vector<64x256xf32>
    %cst_44 = arith.constant 0.000000e+00 : f32
    %80 = vector.broadcast %cst_44 : f32 to vector<64x256xf32>
    %81 = arith.maximumf %79, %80 : vector<64x256xf32>
    %82 = arith.truncf %81 : vector<64x256xf32> to vector<64x256xbf16>
    %cst_45 = arith.constant dense<0.000000e+00> : vector<2x256xf32>
    %83 = tpu.matmul %9, %82, %cst_45 {dimension_numbers = #tpu.dot_dimension_numbers<[1], [0], [0], [1], [0, 0, 1, 1], [], []>} : vector<2x64xbf16>, vector<64x256xbf16>, vector<2x256xf32> -> vector<2x256xf32>
    %84 = vector.broadcast %19 : vector<2x1xf32> to vector<2x256xf32>
    %85 = arith.addf %83, %84 : vector<2x256xf32>
    %c0_46 = arith.constant 0 : index
    %86 = arith.index_cast %55 : i32 to index
    %87 = vector.load %arg4[%c0_46, %86] : memref<2x1024xf32, #tpu.memory_space<vmem>>, vector<2x256xf32>
    tpu.vector_store %arg4[%c0_46, %86], %85 {strides = array<i32>} : memref<2x1024xf32, #tpu.memory_space<vmem>>, vector<2x256xf32>,
    %c2_i32 = arith.constant 2 : i32
    %c256_i32_47 = arith.constant 256 : i32
    %88 = arith.muli %c2_i32, %c256_i32_47 : i32
    %89 = tpu.assume_multiple %88, 256 : i32
    %c0_48 = arith.constant 0 : index
    %90 = arith.index_cast %89 : i32 to index
    %91 = vector.load %arg1[%c0_48, %90] : memref<6x1024xf32, #tpu.memory_space<vmem>>, vector<6x256xf32>
    %92 = arith.truncf %91 : vector<6x256xf32> to vector<6x256xbf16>
    %cst_49 = arith.constant dense<0.000000e+00> : vector<12x256xf32>
    %93 = tpu.matmul %1, %92, %cst_49 {dimension_numbers = #tpu.dot_dimension_numbers<[1], [0], [0], [1], [0, 0, 1, 1], [], []>} : vector<12x6xbf16>, vector<6x256xbf16>, vector<12x256xf32> -> vector<12x256xf32>
    %94 = vector.broadcast %11 : vector<12x1xf32> to vector<12x256xf32>
    %95 = arith.addf %93, %94 : vector<12x256xf32>
    %cst_50 = arith.constant 0.000000e+00 : f32
    %96 = vector.broadcast %cst_50 : f32 to vector<12x256xf32>
    %97 = arith.maximumf %95, %96 : vector<12x256xf32>
    %98 = arith.truncf %97 : vector<12x256xf32> to vector<12x256xbf16>
    %cst_51 = arith.constant dense<0.000000e+00> : vector<48x256xf32>
    %99 = tpu.matmul %3, %98, %cst_51 {dimension_numbers = #tpu.dot_dimension_numbers<[1], [0], [0], [1], [0, 0, 1, 1], [], []>} : vector<48x12xbf16>, vector<12x256xbf16>, vector<48x256xf32> -> vector<48x256xf32>
    %100 = vector.broadcast %13 : vector<48x1xf32> to vector<48x256xf32>
    %101 = arith.addf %99, %100 : vector<48x256xf32>
    %cst_52 = arith.constant 0.000000e+00 : f32
    %102 = vector.broadcast %cst_52 : f32 to vector<48x256xf32>
    %103 = arith.maximumf %101, %102 : vector<48x256xf32>
    %104 = arith.truncf %103 : vector<48x256xf32> to vector<48x256xbf16>
    %cst_53 = arith.constant dense<0.000000e+00> : vector<96x256xf32>
    %105 = tpu.matmul %5, %104, %cst_53 {dimension_numbers = #tpu.dot_dimension_numbers<[1], [0], [0], [1], [0, 0, 1, 1], [], []>} : vector<96x48xbf16>, vector<48x256xbf16>, vector<96x256xf32> -> vector<96x256xf32>
    %106 = vector.broadcast %15 : vector<96x1xf32> to vector<96x256xf32>
    %107 = arith.addf %105, %106 : vector<96x256xf32>
    %cst_54 = arith.constant 0.000000e+00 : f32
    %108 = vector.broadcast %cst_54 : f32 to vector<96x256xf32>
    %109 = arith.maximumf %107, %108 : vector<96x256xf32>
    %110 = arith.truncf %109 : vector<96x256xf32> to vector<96x256xbf16>
    %cst_55 = arith.constant dense<0.000000e+00> : vector<64x256xf32>
    %111 = tpu.matmul %7, %110, %cst_55 {dimension_numbers = #tpu.dot_dimension_numbers<[1], [0], [0], [1], [0, 0, 1, 1], [], []>} : vector<64x96xbf16>, vector<96x256xbf16>, vector<64x256xf32> -> vector<64x256xf32>
    %112 = vector.broadcast %17 : vector<64x1xf32> to vector<64x256xf32>
    %113 = arith.addf %111, %112 : vector<64x256xf32>
    %cst_56 = arith.constant 0.000000e+00 : f32
    %114 = vector.broadcast %cst_56 : f32 to vector<64x256xf32>
    %115 = arith.maximumf %113, %114 : vector<64x256xf32>
    %116 = arith.truncf %115 : vector<64x256xf32> to vector<64x256xbf16>
    %cst_57 = arith.constant dense<0.000000e+00> : vector<2x256xf32>
    %117 = tpu.matmul %9, %116, %cst_57 {dimension_numbers = #tpu.dot_dimension_numbers<[1], [0], [0], [1], [0, 0, 1, 1], [], []>} : vector<2x64xbf16>, vector<64x256xbf16>, vector<2x256xf32> -> vector<2x256xf32>
    %118 = vector.broadcast %19 : vector<2x1xf32> to vector<2x256xf32>
    %119 = arith.addf %117, %118 : vector<2x256xf32>
    %c0_58 = arith.constant 0 : index
    %120 = arith.index_cast %89 : i32 to index
    %121 = vector.load %arg4[%c0_58, %120] : memref<2x1024xf32, #tpu.memory_space<vmem>>, vector<2x256xf32>
    tpu.vector_store %arg4[%c0_58, %120], %119 {strides = array<i32>} : memref<2x1024xf32, #tpu.memory_space<vmem>>, vector<2x256xf32>,
    %c3_i32 = arith.constant 3 : i32
    %c256_i32_59 = arith.constant 256 : i32
    %122 = arith.muli %c3_i32, %c256_i32_59 : i32
    %123 = tpu.assume_multiple %122, 256 : i32
    %c0_60 = arith.constant 0 : index
    %124 = arith.index_cast %123 : i32 to index
    %125 = vector.load %arg1[%c0_60, %124] : memref<6x1024xf32, #tpu.memory_space<vmem>>, vector<6x256xf32>
    %126 = arith.truncf %125 : vector<6x256xf32> to vector<6x256xbf16>
    %cst_61 = arith.constant dense<0.000000e+00> : vector<12x256xf32>
    %127 = tpu.matmul %1, %126, %cst_61 {dimension_numbers = #tpu.dot_dimension_numbers<[1], [0], [0], [1], [0, 0, 1, 1], [], []>} : vector<12x6xbf16>, vector<6x256xbf16>, vector<12x256xf32> -> vector<12x256xf32>
    %128 = vector.broadcast %11 : vector<12x1xf32> to vector<12x256xf32>
    %129 = arith.addf %127, %128 : vector<12x256xf32>
    %cst_62 = arith.constant 0.000000e+00 : f32
    %130 = vector.broadcast %cst_62 : f32 to vector<12x256xf32>
    %131 = arith.maximumf %129, %130 : vector<12x256xf32>
    %132 = arith.truncf %131 : vector<12x256xf32> to vector<12x256xbf16>
    %cst_63 = arith.constant dense<0.000000e+00> : vector<48x256xf32>
    %133 = tpu.matmul %3, %132, %cst_63 {dimension_numbers = #tpu.dot_dimension_numbers<[1], [0], [0], [1], [0, 0, 1, 1], [], []>} : vector<48x12xbf16>, vector<12x256xbf16>, vector<48x256xf32> -> vector<48x256xf32>
    %134 = vector.broadcast %13 : vector<48x1xf32> to vector<48x256xf32>
    %135 = arith.addf %133, %134 : vector<48x256xf32>
    %cst_64 = arith.constant 0.000000e+00 : f32
    %136 = vector.broadcast %cst_64 : f32 to vector<48x256xf32>
    %137 = arith.maximumf %135, %136 : vector<48x256xf32>
    %138 = arith.truncf %137 : vector<48x256xf32> to vector<48x256xbf16>
    %cst_65 = arith.constant dense<0.000000e+00> : vector<96x256xf32>
    %139 = tpu.matmul %5, %138, %cst_65 {dimension_numbers = #tpu.dot_dimension_numbers<[1], [0], [0], [1], [0, 0, 1, 1], [], []>} : vector<96x48xbf16>, vector<48x256xbf16>, vector<96x256xf32> -> vector<96x256xf32>
    %140 = vector.broadcast %15 : vector<96x1xf32> to vector<96x256xf32>
    %141 = arith.addf %139, %140 : vector<96x256xf32>
    %cst_66 = arith.constant 0.000000e+00 : f32
    %142 = vector.broadcast %cst_66 : f32 to vector<96x256xf32>
    %143 = arith.maximumf %141, %142 : vector<96x256xf32>
    %144 = arith.truncf %143 : vector<96x256xf32> to vector<96x256xbf16>
    %cst_67 = arith.constant dense<0.000000e+00> : vector<64x256xf32>
    %145 = tpu.matmul %7, %144, %cst_67 {dimension_numbers = #tpu.dot_dimension_numbers<[1], [0], [0], [1], [0, 0, 1, 1], [], []>} : vector<64x96xbf16>, vector<96x256xbf16>, vector<64x256xf32> -> vector<64x256xf32>
    %146 = vector.broadcast %17 : vector<64x1xf32> to vector<64x256xf32>
    %147 = arith.addf %145, %146 : vector<64x256xf32>
    %cst_68 = arith.constant 0.000000e+00 : f32
    %148 = vector.broadcast %cst_68 : f32 to vector<64x256xf32>
    %149 = arith.maximumf %147, %148 : vector<64x256xf32>
    %150 = arith.truncf %149 : vector<64x256xf32> to vector<64x256xbf16>
    %cst_69 = arith.constant dense<0.000000e+00> : vector<2x256xf32>
    %151 = tpu.matmul %9, %150, %cst_69 {dimension_numbers = #tpu.dot_dimension_numbers<[1], [0], [0], [1], [0, 0, 1, 1], [], []>} : vector<2x64xbf16>, vector<64x256xbf16>, vector<2x256xf32> -> vector<2x256xf32>
    %152 = vector.broadcast %19 : vector<2x1xf32> to vector<2x256xf32>
    %153 = arith.addf %151, %152 : vector<2x256xf32>
    %c0_70 = arith.constant 0 : index
    %154 = arith.index_cast %123 : i32 to index
    %155 = vector.load %arg4[%c0_70, %154] : memref<2x1024xf32, #tpu.memory_space<vmem>>, vector<2x256xf32>
    tpu.vector_store %arg4[%c0_70, %154], %153 {strides = array<i32>} : memref<2x1024xf32, #tpu.memory_space<vmem>>, vector<2x256xf32>,
    %c4_i32 = arith.constant 4 : i32
    return
  }
  func.func @transform_0(%arg0: i32) -> (i32, i32) {
    %c0_i32 = arith.constant 0 : i32
    %c0_i32_0 = arith.constant 0 : i32
    return %c0_i32, %arg0 : i32, i32
  }
  func.func @transform_1(%arg0: i32) -> (i32, i32, i32) {
    %c0_i32 = arith.constant 0 : i32
    %c0_i32_0 = arith.constant 0 : i32
    %c0_i32_1 = arith.constant 0 : i32
    %c0_i32_2 = arith.constant 0 : i32
    return %c0_i32, %c0_i32_0, %c0_i32_1 : i32, i32, i32
  }
  func.func @transform_2(%arg0: i32) -> (i32, i32, i32) {
    %c0_i32 = arith.constant 0 : i32
    %c0_i32_0 = arith.constant 0 : i32
    %c0_i32_1 = arith.constant 0 : i32
    %c0_i32_2 = arith.constant 0 : i32
    return %c0_i32, %c0_i32_0, %c0_i32_1 : i32, i32, i32
  }
  func.func @transform_3(%arg0: i32) -> (i32, i32) {
    %c0_i32 = arith.constant 0 : i32
    %c0_i32_0 = arith.constant 0 : i32
    return %c0_i32, %arg0 : i32, i32
  }
}

</mosaic_0001>

<llo_original>
// kernel: tpu_custom_call.1
$region0: #{tpu_custom_call.1}
  #allocation0 [shape = 'u32[]', space=smem, size = 0x4, offset = 0x4, fixed_abs, tag = 'smem constant byte address 0x4 - core index']
  #allocation1 [shape = 'u32[144,128]{1,0:T(1,128)}', space=vmem, size = 0x12000, scoped, tag = 'internal scratch']
  %s0 = inlined_call_operand.vmem [shape: f32[6,2048], index: 0, kind: input, shape index: {}]
  %s1 = inlined_call_operand.vmem [shape: bf16[5,96,96], index: 1, kind: input, shape index: {}]
  %s2 = inlined_call_operand.vmem [shape: f32[5,96,1], index: 2, kind: input, shape index: {}]
  %s3 = inlined_call_operand.hbm [shape: f32[2,2048], index: 3, kind: output, shape index: {}]
  %s4 = sld [smem:[#allocation0]]
  $region45: #{tpu_custom_call.1} parent=0
    _
  %s6 = ssub.s32 1, %s4
  %s7 = scalar_select 0, %s6, %s4
  $region1: #{tpu_custom_call.1} parent=0
    #allocation2 [shape = 'u8[16384]{0}', space=vmem, size = 0x4000, scoped, tag = 'output window, operand 0']
    #allocation3 [shape = 's32[2]{0}', space=sflag, size = 0x8, scoped, tag = 'scoped memory for tpu_custom_call.1']
    %8 = vsyncpa [#allocation3], 0
    %s9 = scalar_lea.sflag [#allocation3], 1
    %10 = vsyncpa %s9, 0
    loop: start=0, step=1, limit=4
    $region2: #{tpu_custom_call.1} parent=1 // loop_pre_header
      _
    $region3: #{tpu_custom_call.1} parent=1 // loop_header
      %s12 = sphi 0, %s16
      %p13 = scmp.ge.s32.totalorder %s12, 4
      %s22 = sphi 0, %s24
      %s25 = sphi 0, %s22
      %s26 = sphi 0, %s25
      %s42 = sphi 0, %s26
      %s46 = sphi 0, %s46
      %s48 = sphi 0, %s46
      %s49 = sphi 0, %s48
      %s63 = sphi 0, %s49
      %s67 = sphi 0, %s67
      %s69 = sphi 0, %s67
      %s70 = sphi 0, %s69
      %s84 = sphi 0, %s70
      %s90 = sphi 0, %s92
      %s93 = sphi 0, %s90
      %s94 = sphi 0, %s93
      %s110 = sphi 0, %s94
    $region4: #{tpu_custom_call.1} parent=1 // loop_header_branch
      %15 = sbr.rel (%p13) target = $region8
    $region5: #{tpu_custom_call.1} parent=1 // loop_body
      %s17 = ssub.s32 %s12, 1
      %s18 = ssub.s32 %s12, 2
      %s19 = sadd.s32 %s12, 1
      %s20 = ssub.s32 %s12, %s19
      %p21 = scmp.eq.s32.totalorder %s20, 0
      %s23 = sadd.s32 %s22, 1
      %s24 = scalar_select %p21, %s22, %s23
      %p27 = pneg %p21
      %p28 = scmp.eq.s32.totalorder %s12, 1
      %p29 = por %p27, %p28
      %p30 = scmp.ne.s32.totalorder %s22, %s25
      %p31 = scmp.eq.s32.totalorder %s12, 0
      %p32 = por %p30, %p31
      %p33 = scmp.ne.s32.totalorder %s22, %s25
      %p34 = scmp.eq.s32.totalorder %s17, 1
      %p35 = por %p33, %p34
      %p36 = scmp.ne.s32.totalorder %s25, %s26
      %p37 = scmp.eq.s32.totalorder %s17, 0
      %p38 = por %p36, %p37
      %p39 = scmp.ne.s32.totalorder %s25, %s26
      %p40 = scmp.eq.s32.totalorder %s18, 1
      %p41 = por %p39, %p40
      %p43 = scmp.ne.s32.totalorder %s26, %s42
      %p44 = scmp.eq.s32.totalorder %s18, 0
      %p45 = por %p43, %p44
      %s47 = sadd.s32 %s46, 1
      %p50 = scmp.eq.s32.totalorder %s12, 1
      %p51 = scmp.ne.s32.totalorder %s46, %s48
      %p52 = scmp.eq.s32.totalorder %s12, 0
      %p53 = por %p51, %p52
      %p54 = scmp.ne.s32.totalorder %s46, %s48
      %p55 = scmp.eq.s32.totalorder %s17, 1
      %p56 = por %p54, %p55
      %p57 = scmp.ne.s32.totalorder %s48, %s49
      %p58 = scmp.eq.s32.totalorder %s17, 0
      %p59 = por %p57, %p58
      %p60 = scmp.ne.s32.totalorder %s48, %s49
      %p61 = scmp.eq.s32.totalorder %s18, 1
      %p62 = por %p60, %p61
      %p64 = scmp.ne.s32.totalorder %s49, %s63
      %p65 = scmp.eq.s32.totalorder %s18, 0
      %p66 = por %p64, %p65
      %s68 = sadd.s32 %s67, 1
      %p71 = scmp.eq.s32.totalorder %s12, 1
      %p72 = scmp.ne.s32.totalorder %s67, %s69
      %p73 = scmp.eq.s32.totalorder %s12, 0
      %p74 = por %p72, %p73
      %p75 = scmp.ne.s32.totalorder %s67, %s69
      %p76 = scmp.eq.s32.totalorder %s17, 1
      %p77 = por %p75, %p76
      %p78 = scmp.ne.s32.totalorder %s69, %s70
      %p79 = scmp.eq.s32.totalorder %s17, 0
      %p80 = por %p78, %p79
      %p81 = scmp.ne.s32.totalorder %s69, %s70
      %p82 = scmp.eq.s32.totalorder %s18, 1
      %p83 = por %p81, %p82
      %p85 = scmp.ne.s32.totalorder %s70, %s84
      %p86 = scmp.eq.s32.totalorder %s18, 0
      %p87 = por %p85, %p86
      %s88 = ssub.s32 %s12, %s19
      %p89 = scmp.eq.s32.totalorder %s88, 0
      %s91 = sadd.s32 %s90, 1
      %s92 = scalar_select %p89, %s90, %s91
      %p95 = pneg %p89
      %p96 = scmp.eq.s32.totalorder %s12, 1
      %p97 = por %p95, %p96
      %p98 = scmp.ne.s32.totalorder %s90, %s93
      %p99 = scmp.eq.s32.totalorder %s12, 0
      %p100 = por %p98, %p99
      %p101 = scmp.ne.s32.totalorder %s90, %s93
      %p102 = scmp.eq.s32.totalorder %s17, 1
      %p103 = por %p101, %p102
      %p104 = scmp.ne.s32.totalorder %s93, %s94
      %p105 = scmp.eq.s32.totalorder %s17, 0
      %p106 = por %p104, %p105
      %p107 = scmp.ne.s32.totalorder %s93, %s94
      %p108 = scmp.eq.s32.totalorder %s18, 1
      %p109 = por %p107, %p108
      %p111 = scmp.ne.s32.totalorder %s94, %s110
      %p112 = scmp.eq.s32.totalorder %s18, 0
      %p113 = por %p111, %p112
      %p114 = scmp.le.s32.totalorder 1, %s12
      %p115 = scmp.lt.s32.totalorder %s12, 3
      %p116 = pnand %p114, %p115
      %p117 = pneg %p116
      // Predicated region
      $region9: #{tpu_custom_call.1} parent=5 // pred_check
        _
      $region10: #{tpu_custom_call.1} parent=5 // pred_check_branch
        %119 = sbr.rel (%p116) target = $region12
      $region11: #{tpu_custom_call.1} parent=5 // pred_region
        %s120 = ssub.s32 %s12, 1
        // Predicated region
        $region13: #{tpu_custom_call.1} parent=11 // pred_check
          %p121 = pneg %p59
        $region14: #{tpu_custom_call.1} parent=11 // pred_check_branch
          %123 = sbr.rel (%p121) target = $region16
        $region15: #{tpu_custom_call.1} parent=11 // pred_region
          _
        $region16: #{tpu_custom_call.1} parent=11 // pred_fallthru
          _
        // Predicated region
        $region17: #{tpu_custom_call.1} parent=11 // pred_check
          %p124 = pneg %p80
        $region18: #{tpu_custom_call.1} parent=11 // pred_check_branch
          %126 = sbr.rel (%p124) target = $region20
        $region19: #{tpu_custom_call.1} parent=11 // pred_region
          _
        $region20: #{tpu_custom_call.1} parent=11 // pred_fallthru
          _
      $region12: #{tpu_custom_call.1} parent=5 // pred_fallthru
        _
      %p127 = scmp.lt.s32.totalorder %s12, 2
      // Predicated region
      $region21: #{tpu_custom_call.1} parent=5 // pred_check
        %p128 = pneg %p127
      $region22: #{tpu_custom_call.1} parent=5 // pred_check_branch
        %130 = sbr.rel (%p128) target = $region24
      $region23: #{tpu_custom_call.1} parent=5 // pred_region
        // Predicated region
        $region25: #{tpu_custom_call.1} parent=23 // pred_check
          %p131 = pneg %p32
        $region26: #{tpu_custom_call.1} parent=23 // pred_check_branch
          %133 = sbr.rel (%p131) target = $region28
        $region27: #{tpu_custom_call.1} parent=23 // pred_region
          %s134 = smul.u32 8, %s12
          %p135 = scmp.lt.s32.totalorder %s134, 15
          %s136 = scalar_select %p135, %s134, 15
          %s137 = smul.addr %s136, 8
          %s138 = scalar_lea.vmem %s0, %s137
          %s139 = smul.u32 8, %s12
        $region28: #{tpu_custom_call.1} parent=23 // pred_fallthru
          _
      $region24: #{tpu_custom_call.1} parent=5 // pred_fallthru
        _
      %p140 = scmp.le.s32.totalorder 1, %s12
      %p141 = scmp.lt.s32.totalorder %s12, 3
      %p142 = pnand %p140, %p141
      %p143 = pneg %p142
      // Predicated region
      $region29: #{tpu_custom_call.1} parent=5 // pred_check
        _
      $region30: #{tpu_custom_call.1} parent=5 // pred_check_branch
        %145 = sbr.rel (%p142) target = $region32
      $region31: #{tpu_custom_call.1} parent=5 // pred_region
        %s146 = ssub.s32 %s12, 1
        %s147 = smul.u32 8, %s17
        %p148 = scmp.lt.s32.totalorder %s147, 15
        %s149 = scalar_select %p148, %s147, 15
        %s150 = smul.addr %s149, 8
        %s151 = scalar_lea.vmem %s0, %s150
        %p152 = pneg %p38
        %p153 = pneg %p35
        %p154 = pneg %p59
        %p155 = pneg %p56
        %p156 = pneg %p80
        %p157 = pneg %p77
        %p158 = pneg %p106
        %p159 = pneg %p103
        %s160 = sand.u32 %s93, 1
        %s161 = scalar_lea.sflag [#allocation3], %s160
        %s162 = sand.u32 %s93, 1
        %s163 = smul.addr %s162, 16
        %s164 = scalar_lea.vmem [#allocation2], %s163
        %s165 = smul.u32 8, %s17
        %p166 = scmp.lt.s32.totalorder %s165, 15
        %s167 = scalar_select %p166, %s165, 15
        %s168 = smul.addr %s167, 8
        %s169 = scalar_lea.vmem %s0, %s168
        %s170 = smul.u32 8, %s17
        %s171 = smul.u32 8, %s17
        %v173 = vld [vmem:[%s1] sm:$0xf]
        %v174 = vld [vmem:[%s1 + $0x4] sm:$0x3]
        %s175 = scalar_lea.vmem %s1, 48
        %v176 = vld [vmem:[%s175] sm:$0xf]
        %v177 = vld [vmem:[%s175 + $0x4] sm:$0xf]
        %v178 = vld [vmem:[%s175 + $0x8] sm:$0xf]
        %v179 = vld [vmem:[%s175 + $0xc] sm:$0xf]
        %v180 = vld [vmem:[%s175 + $0x10] sm:$0xf]
        %v181 = vld [vmem:[%s175 + $0x14] sm:$0xf]
        %s182 = scalar_lea.vmem %s1, 96
        %v183 = vld [vmem:[%s182] sm:$0xf]
        %v184 = vld [vmem:[%s182 + $0x4] sm:$0xf]
        %v185 = vld [vmem:[%s182 + $0x8] sm:$0xf]
        %v186 = vld [vmem:[%s182 + $0xc] sm:$0xf]
        %v187 = vld [vmem:[%s182 + $0x10] sm:$0xf]
        %v188 = vld [vmem:[%s182 + $0x14] sm:$0xf]
        %v189 = vld [vmem:[%s182 + $0x18] sm:$0xf]
        %v190 = vld [vmem:[%s182 + $0x1c] sm:$0xf]
        %v191 = vld [vmem:[%s182 + $0x20] sm:$0xf]
        %v192 = vld [vmem:[%s182 + $0x24] sm:$0xf]
        %v193 = vld [vmem:[%s182 + $0x28] sm:$0xf]
        %v194 = vld [vmem:[%s182 + $0x2c] sm:$0xf]
        %s195 = scalar_lea.vmem %s1, 144
        %v196 = vld [vmem:[%s195] sm:$0xf]
        %v197 = vld [vmem:[%s195 + $0x4] sm:$0xf]
        %v198 = vld [vmem:[%s195 + $0x8] sm:$0xf]
        %v199 = vld [vmem:[%s195 + $0xc] sm:$0xf]
        %v200 = vld [vmem:[%s195 + $0x10] sm:$0xf]
        %v201 = vld [vmem:[%s195 + $0x14] sm:$0xf]
        %v202 = vld [vmem:[%s195 + $0x18] sm:$0xf]
        %v203 = vld [vmem:[%s195 + $0x1c] sm:$0xf]
        %s204 = scalar_lea.vmem %s1, 192
        %v205 = vld [vmem:[%s204] sm:$0x1]
        %v206 = vld [vmem:[%s2] sm:$0xff]
        %v207 = vld [vmem:[%s2 + $0x8] sm:$0xf]
        %s208 = scalar_lea.vmem %s2, 96
        %v209 = vld [vmem:[%s208] sm:$0xff]
        %v210 = vld [vmem:[%s208 + $0x8] sm:$0xff]
        %v211 = vld [vmem:[%s208 + $0x10] sm:$0xff]
        %v212 = vld [vmem:[%s208 + $0x18] sm:$0xff]
        %v213 = vld [vmem:[%s208 + $0x20] sm:$0xff]
        %v214 = vld [vmem:[%s208 + $0x28] sm:$0xff]
        %s215 = scalar_lea.vmem %s2, 192
        %v216 = vld [vmem:[%s215] sm:$0xff]
        %v217 = vld [vmem:[%s215 + $0x8] sm:$0xff]
        %v218 = vld [vmem:[%s215 + $0x10] sm:$0xff]
        %v219 = vld [vmem:[%s215 + $0x18] sm:$0xff]
        %v220 = vld [vmem:[%s215 + $0x20] sm:$0xff]
        %v221 = vld [vmem:[%s215 + $0x28] sm:$0xff]
        %v222 = vld [vmem:[%s215 + $0x30] sm:$0xff]
        %v223 = vld [vmem:[%s215 + $0x38] sm:$0xff]
        %v224 = vld [vmem:[%s215 + $0x40] sm:$0xff]
        %v225 = vld [vmem:[%s215 + $0x48] sm:$0xff]
        %v226 = vld [vmem:[%s215 + $0x50] sm:$0xff]
        %v227 = vld [vmem:[%s215 + $0x58] sm:$0xff]
        %s228 = scalar_lea.vmem %s2, 288
        %v229 = vld [vmem:[%s228] sm:$0xff]
        %v230 = vld [vmem:[%s228 + $0x8] sm:$0xff]
        %v231 = vld [vmem:[%s228 + $0x10] sm:$0xff]
        %v232 = vld [vmem:[%s228 + $0x18] sm:$0xff]
        %v233 = vld [vmem:[%s228 + $0x20] sm:$0xff]
        %v234 = vld [vmem:[%s228 + $0x28] sm:$0xff]
        %v235 = vld [vmem:[%s228 + $0x30] sm:$0xff]
        %v236 = vld [vmem:[%s228 + $0x38] sm:$0xff]
        %s237 = scalar_lea.vmem %s2, 384
        %v238 = vld [vmem:[%s237] sm:$0x3]
        %v239 = vld [vmem:[%s169] sm:$0x3f]
        %v240 = vld [vmem:[%s169 + $0x8] sm:$0x3f]
        %v241 = vpack.c.bf16 %v239, %v239
        %v242 = vpack.c.bf16 %v240, %v240
        %244 = vset.pattern.permute.xlu0 0
        %245 = vperm.xlu0 %244, %v206
        %v246 = vpop.permute.xlu0 %245
        %249 = vset.pattern.permute.xlu0 0
        %250 = vperm.xlu0 %249, %v207
        %v251 = vpop.permute.xlu0 %250
        %v255 = vunpack.c.l.b16 %v173
        %v256 = vunpack.c.l.b16 %v174
        %v257 = vpack.c.b16 %v256, %v255
        %vm258 = vcmask 48128
        %v260 = vsel %vm258, %v257, 0
        %vm262 = vcmask 1042432
        %v264 = vsel %vm262, %v241, 0
        %v267 = vsel %vm262, %v242, 0
        %269 = vmatprep.subr.bf16.mxu0 %v267
        %270 = vmatpush1.bf16.msra.mxu0 %v264
        %271 = vmatprep.subr.bf16.mxu0 0
        %272 = vmatpush1.bf16.msra.mxu0 0
        %273 = vmatprep.subr.bf16.mxu0 0
        %274 = vmatpush1.bf16.msra.mxu0 0
        %275 = vmatprep.subr.bf16.mxu0 0
        %276 = vmatpush1.bf16.msra.mxu0 0
        %277 = vmatprep.subr.bf16.mxu0 0
        %278 = vmatpush1.bf16.msra.mxu0 0
        %279 = vmatprep.subr.bf16.mxu0 0
        %280 = vmatpush1.bf16.msra.mxu0 0
        %281 = vmatprep.subr.bf16.mxu0 0
        %282 = vmatpush1.bf16.msra.mxu0 0
        %283 = vmatprep.subr.bf16.mxu0 0
        %284 = vmatpush1.bf16.msra.mxu0 0
        %285 = vmatprep.subr.bf16.mxu0 0
        %286 = vmatpush1.bf16.msra.mxu0 0
        %287 = vmatprep.subr.bf16.mxu0 0
        %288 = vmatpush1.bf16.msra.mxu0 0
        %289 = vmatprep.subr.bf16.mxu0 0
        %290 = vmatpush1.bf16.msra.mxu0 0
        %291 = vmatprep.subr.bf16.mxu0 0
        %292 = vmatpush1.bf16.msra.mxu0 0
        %293 = vmatprep.subr.bf16.mxu0 0
        %294 = vmatpush1.bf16.msra.mxu0 0
        %295 = vmatprep.subr.bf16.mxu0 0
        %296 = vmatpush1.bf16.msra.mxu0 0
        %297 = vmatprep.subr.bf16.mxu0 0
        %298 = vmatpush1.bf16.msra.mxu0 0
        %299 = vmatprep.subr.bf16.mxu0 0
        %300 = vmatpush1.bf16.msra.mxu0 0
        %301 = vmatprep.mubr.bf16.mxu0 0
        %302 = vmatmul.mubr.bf16.gmra.mrb[0].mxu0 %v260
        %v303 = vpop.f32.mrb[0].mxu0
        %v304 = vadd.f32 %v246, %v303
        %v305 = vpop.f32.mrb[0].mxu0
        %v306 = vadd.f32 %v246, %v305
        %v307 = vpop.f32.mrb[0].mxu0
        %v308 = vadd.f32 %v251, %v307
        %v309 = vpop.f32.mrb[0].mxu0
        %v310 = vadd.f32 %v251, %v309
        %311 = vdwg.mxu0
        %v312 = vmax.f32 %v304, 0.0
        %v313 = vmax.f32 %v306, 0.0
        %v314 = vmax.f32 %v308, 0.0
        %v315 = vmax.f32 %v310, 0.0
        %v316 = vpack.c.bf16 %v314, %v312
        %v317 = vpack.c.bf16 %v315, %v313
        %319 = vset.pattern.permute.xlu0 0
        %320 = vperm.xlu0 %319, %v209
        %v321 = vpop.permute.xlu0 %320
        %324 = vset.pattern.permute.xlu0 0
        %325 = vperm.xlu0 %324, %v210
        %v326 = vpop.permute.xlu0 %325
        %329 = vset.pattern.permute.xlu0 0
        %330 = vperm.xlu0 %329, %v211
        %v331 = vpop.permute.xlu0 %330
        %334 = vset.pattern.permute.xlu0 0
        %335 = vperm.xlu0 %334, %v212
        %v336 = vpop.permute.xlu0 %335
        %339 = vset.pattern.permute.xlu0 0
        %340 = vperm.xlu0 %339, %v213
        %v341 = vpop.permute.xlu0 %340
        %344 = vset.pattern.permute.xlu0 0
        %345 = vperm.xlu0 %344, %v214
        %v346 = vpop.permute.xlu0 %345
        %v354 = vunpack.c.l.b16 %v176
        %v355 = vunpack.c.l.b16 %v177
        %v356 = vunpack.c.l.b16 %v178
        %v357 = vunpack.c.l.b16 %v179
        %v358 = vunpack.c.l.b16 %v180
        %v359 = vunpack.c.l.b16 %v181
        %v360 = vpack.c.b16 %v355, %v354
        %v361 = vpack.c.b16 %v357, %v356
        %v362 = vpack.c.b16 %v359, %v358
        %vm363 = vcmask 97280
        %v365 = vsel %vm363, %v360, 0
        %v368 = vsel %vm363, %v361, 0
        %v371 = vsel %vm363, %v362, 0
        %vm373 = vcmask 1045504
        %v375 = vsel %vm373, %v316, 0
        %v378 = vsel %vm373, %v317, 0
        %380 = vmatprep.subr.bf16.mxu0 %v378
        %381 = vmatpush1.bf16.msra.mxu0 %v375
        %382 = vmatprep.subr.bf16.mxu0 0
        %383 = vmatpush1.bf16.msra.mxu0 0
        %384 = vmatprep.subr.bf16.mxu0 0
        %385 = vmatpush1.bf16.msra.mxu0 0
        %386 = vmatprep.subr.bf16.mxu0 0
        %387 = vmatpush1.bf16.msra.mxu0 0
        %388 = vmatprep.subr.bf16.mxu0 0
        %389 = vmatpush1.bf16.msra.mxu0 0
        %390 = vmatprep.subr.bf16.mxu0 0
        %391 = vmatpush1.bf16.msra.mxu0 0
        %392 = vmatprep.subr.bf16.mxu0 0
        %393 = vmatpush1.bf16.msra.mxu0 0
        %394 = vmatprep.subr.bf16.mxu0 0
        %395 = vmatpush1.bf16.msra.mxu0 0
        %396 = vmatprep.subr.bf16.mxu0 0
        %397 = vmatpush1.bf16.msra.mxu0 0
        %398 = vmatprep.subr.bf16.mxu0 0
        %399 = vmatpush1.bf16.msra.mxu0 0
        %400 = vmatprep.subr.bf16.mxu0 0
        %401 = vmatpush1.bf16.msra.mxu0 0
        %402 = vmatprep.subr.bf16.mxu0 0
        %403 = vmatpush1.bf16.msra.mxu0 0
        %404 = vmatprep.subr.bf16.mxu0 0
        %405 = vmatpush1.bf16.msra.mxu0 0
        %406 = vmatprep.subr.bf16.mxu0 0
        %407 = vmatpush1.bf16.msra.mxu0 0
        %408 = vmatprep.subr.bf16.mxu0 0
        %409 = vmatpush1.bf16.msra.mxu0 0
        %410 = vmatprep.subr.bf16.mxu0 0
        %411 = vmatpush1.bf16.msra.mxu0 0
        %412 = vmatprep.mubr.bf16.mxu0 0
        %413 = vmatmul.mubr.bf16.gmra.mrb[0].mxu0 %v365
        %v414 = vpop.f32.mrb[0].mxu0
        %v415 = vadd.f32 %v321, %v414
        %v416 = vpop.f32.mrb[0].mxu0
        %v417 = vadd.f32 %v321, %v416
        %v418 = vpop.f32.mrb[0].mxu0
        %v419 = vadd.f32 %v326, %v418
        %v420 = vpop.f32.mrb[0].mxu0
        %v421 = vadd.f32 %v326, %v420
        %422 = vmatprep.mubr.bf16.mxu0 0
        %423 = vmatmul.mubr.bf16.gmra.mrb[0].mxu0 %v368
        %v424 = vpop.f32.mrb[0].mxu0
        %v425 = vadd.f32 %v331, %v424
        %v426 = vpop.f32.mrb[0].mxu0
        %v427 = vadd.f32 %v331, %v426
        %v428 = vpop.f32.mrb[0].mxu0
        %v429 = vadd.f32 %v336, %v428
        %v430 = vpop.f32.mrb[0].mxu0
        %v431 = vadd.f32 %v336, %v430
        %432 = vmatprep.mubr.bf16.mxu0 0
        %433 = vmatmul.mubr.bf16.gmra.mrb[0].mxu0 %v371
        %v434 = vpop.f32.mrb[0].mxu0
        %v435 = vadd.f32 %v341, %v434
        %v436 = vpop.f32.mrb[0].mxu0
        %v437 = vadd.f32 %v341, %v436
        %v438 = vpop.f32.mrb[0].mxu0
        %v439 = vadd.f32 %v346, %v438
        %v440 = vpop.f32.mrb[0].mxu0
        %v441 = vadd.f32 %v346, %v440
        %442 = vdwg.mxu0
        %v443 = vmax.f32 %v415, 0.0
        %v444 = vmax.f32 %v417, 0.0
        %v445 = vmax.f32 %v419, 0.0
        %v446 = vmax.f32 %v421, 0.0
        %v447 = vmax.f32 %v425, 0.0
        %v448 = vmax.f32 %v427, 0.0
        %v449 = vmax.f32 %v429, 0.0
        %v450 = vmax.f32 %v431, 0.0
        %v451 = vmax.f32 %v435, 0.0
        %v452 = vmax.f32 %v437, 0.0
        %v453 = vmax.f32 %v439, 0.0
        %v454 = vmax.f32 %v441, 0.0
        %v455 = vpack.c.bf16 %v445, %v443
        %v456 = vpack.c.bf16 %v446, %v444
        %v457 = vpack.c.bf16 %v449, %v447
        %v458 = vpack.c.bf16 %v450, %v448
        %v459 = vpack.c.bf16 %v453, %v451
        %v460 = vpack.c.bf16 %v454, %v452
        %462 = vset.pattern.permute.xlu0 0
        %463 = vperm.xlu0 %462, %v216
        %v464 = vpop.permute.xlu0 %463
        %467 = vset.pattern.permute.xlu0 0
        %468 = vperm.xlu0 %467, %v217
        %v469 = vpop.permute.xlu0 %468
        %472 = vset.pattern.permute.xlu0 0
        %473 = vperm.xlu0 %472, %v218
        %v474 = vpop.permute.xlu0 %473
        %477 = vset.pattern.permute.xlu0 0
        %478 = vperm.xlu0 %477, %v219
        %v479 = vpop.permute.xlu0 %478
        %482 = vset.pattern.permute.xlu0 0
        %483 = vperm.xlu0 %482, %v220
        %v484 = vpop.permute.xlu0 %483
        %487 = vset.pattern.permute.xlu0 0
        %488 = vperm.xlu0 %487, %v221
        %v489 = vpop.permute.xlu0 %488
        %492 = vset.pattern.permute.xlu0 0
        %493 = vperm.xlu0 %492, %v222
        %v494 = vpop.permute.xlu0 %493
        %497 = vset.pattern.permute.xlu0 0
        %498 = vperm.xlu0 %497, %v223
        %v499 = vpop.permute.xlu0 %498
        %502 = vset.pattern.permute.xlu0 0
        %503 = vperm.xlu0 %502, %v224
        %v504 = vpop.permute.xlu0 %503
        %507 = vset.pattern.permute.xlu0 0
        %508 = vperm.xlu0 %507, %v225
        %v509 = vpop.permute.xlu0 %508
        %512 = vset.pattern.permute.xlu0 0
        %513 = vperm.xlu0 %512, %v226
        %v514 = vpop.permute.xlu0 %513
        %517 = vset.pattern.permute.xlu0 0
        %518 = vperm.xlu0 %517, %v227
        %v519 = vpop.permute.xlu0 %518
        %v533 = vunpack.c.l.b16 %v183
        %v534 = vunpack.c.l.b16 %v184
        %v535 = vunpack.c.l.b16 %v185
        %v536 = vunpack.c.l.b16 %v186
        %v537 = vunpack.c.l.b16 %v187
        %v538 = vunpack.c.l.b16 %v188
        %v539 = vunpack.c.l.b16 %v189
        %v540 = vunpack.c.l.b16 %v190
        %v541 = vunpack.c.l.b16 %v191
        %v542 = vunpack.c.l.b16 %v192
        %v543 = vunpack.c.l.b16 %v193
        %v544 = vunpack.c.l.b16 %v194
        %v545 = vpack.c.b16 %v534, %v533
        %v546 = vpack.c.b16 %v536, %v535
        %v547 = vpack.c.b16 %v538, %v537
        %v548 = vpack.c.b16 %v540, %v539
        %v549 = vpack.c.b16 %v542, %v541
        %v550 = vpack.c.b16 %v544, %v543
        %vm551 = vcmask 392192
        %v553 = vsel %vm551, %v545, 0
        %v556 = vsel %vm551, %v546, 0
        %v559 = vsel %vm551, %v547, 0
        %v562 = vsel %vm551, %v548, 0
        %v565 = vsel %vm551, %v549, 0
        %v568 = vsel %vm551, %v550, 0
        %570 = vmatprep.subr.bf16.mxu0 %v456
        %571 = vmatpush1.bf16.msra.mxu0 %v455
        %572 = vmatprep.subr.bf16.mxu0 %v458
        %573 = vmatpush1.bf16.msra.mxu0 %v457
        %574 = vmatprep.subr.bf16.mxu0 %v460
        %575 = vmatpush1.bf16.msra.mxu0 %v459
        %576 = vmatprep.subr.bf16.mxu0 0
        %577 = vmatpush1.bf16.msra.mxu0 0
        %578 = vmatprep.subr.bf16.mxu0 0
        %579 = vmatpush1.bf16.msra.mxu0 0
        %580 = vmatprep.subr.bf16.mxu0 0
        %581 = vmatpush1.bf16.msra.mxu0 0
        %582 = vmatprep.subr.bf16.mxu0 0
        %583 = vmatpush1.bf16.msra.mxu0 0
        %584 = vmatprep.subr.bf16.mxu0 0
        %585 = vmatpush1.bf16.msra.mxu0 0
        %586 = vmatprep.subr.bf16.mxu0 0
        %587 = vmatpush1.bf16.msra.mxu0 0
        %588 = vmatprep.subr.bf16.mxu0 0
        %589 = vmatpush1.bf16.msra.mxu0 0
        %590 = vmatprep.subr.bf16.mxu0 0
        %591 = vmatpush1.bf16.msra.mxu0 0
        %592 = vmatprep.subr.bf16.mxu0 0
        %593 = vmatpush1.bf16.msra.mxu0 0
        %594 = vmatprep.subr.bf16.mxu0 0
        %595 = vmatpush1.bf16.msra.mxu0 0
        %596 = vmatprep.subr.bf16.mxu0 0
        %597 = vmatpush1.bf16.msra.mxu0 0
        %598 = vmatprep.subr.bf16.mxu0 0
        %599 = vmatpush1.bf16.msra.mxu0 0
        %600 = vmatprep.subr.bf16.mxu0 0
        %601 = vmatpush1.bf16.msra.mxu0 0
        %602 = vmatprep.mubr.bf16.mxu0 0
        %603 = vmatmul.mubr.bf16.gmra.mrb[0].mxu0 %v553
        %v604 = vpop.f32.mrb[0].mxu0
        %v605 = vadd.f32 %v464, %v604
        %v606 = vpop.f32.mrb[0].mxu0
        %v607 = vadd.f32 %v464, %v606
        %v608 = vpop.f32.mrb[0].mxu0
        %v609 = vadd.f32 %v469, %v608
        %v610 = vpop.f32.mrb[0].mxu0
        %v611 = vadd.f32 %v469, %v610
        %612 = vmatprep.mubr.bf16.mxu0 0
        %613 = vmatmul.mubr.bf16.gmra.mrb[0].mxu0 %v556
        %v614 = vpop.f32.mrb[0].mxu0
        %v615 = vadd.f32 %v474, %v614
        %v616 = vpop.f32.mrb[0].mxu0
        %v617 = vadd.f32 %v474, %v616
        %v618 = vpop.f32.mrb[0].mxu0
        %v619 = vadd.f32 %v479, %v618
        %v620 = vpop.f32.mrb[0].mxu0
        %v621 = vadd.f32 %v479, %v620
        %622 = vmatprep.mubr.bf16.mxu0 0
        %623 = vmatmul.mubr.bf16.gmra.mrb[0].mxu0 %v559
        %v624 = vpop.f32.mrb[0].mxu0
        %v625 = vadd.f32 %v484, %v624
        %v626 = vpop.f32.mrb[0].mxu0
        %v627 = vadd.f32 %v484, %v626
        %v628 = vpop.f32.mrb[0].mxu0
        %v629 = vadd.f32 %v489, %v628
        %v630 = vpop.f32.mrb[0].mxu0
        %v631 = vadd.f32 %v489, %v630
        %632 = vmatprep.mubr.bf16.mxu0 0
        %633 = vmatmul.mubr.bf16.gmra.mrb[0].mxu0 %v562
        %v634 = vpop.f32.mrb[0].mxu0
        %v635 = vadd.f32 %v494, %v634
        %v636 = vpop.f32.mrb[0].mxu0
        %v637 = vadd.f32 %v494, %v636
        %v638 = vpop.f32.mrb[0].mxu0
        %v639 = vadd.f32 %v499, %v638
        %v640 = vpop.f32.mrb[0].mxu0
        %v641 = vadd.f32 %v499, %v640
        %642 = vmatprep.mubr.bf16.mxu0 0
        %643 = vmatmul.mubr.bf16.gmra.mrb[0].mxu0 %v565
        %v644 = vpop.f32.mrb[0].mxu0
        %v645 = vadd.f32 %v504, %v644
        %v646 = vpop.f32.mrb[0].mxu0
        %v647 = vadd.f32 %v504, %v646
        %v648 = vpop.f32.mrb[0].mxu0
        %v649 = vadd.f32 %v509, %v648
        %v650 = vpop.f32.mrb[0].mxu0
        %v651 = vadd.f32 %v509, %v650
        %652 = vmatprep.mubr.bf16.mxu0 0
        %653 = vmatmul.mubr.bf16.gmra.mrb[0].mxu0 %v568
        %v654 = vpop.f32.mrb[0].mxu0
        %v655 = vadd.f32 %v514, %v654
        %v656 = vpop.f32.mrb[0].mxu0
        %v657 = vadd.f32 %v514, %v656
        %v658 = vpop.f32.mrb[0].mxu0
        %v659 = vadd.f32 %v519, %v658
        %v660 = vpop.f32.mrb[0].mxu0
        %v661 = vadd.f32 %v519, %v660
        %662 = vdwg.mxu0
        %v663 = vmax.f32 %v605, 0.0
        %v664 = vmax.f32 %v607, 0.0
        %v665 = vmax.f32 %v609, 0.0
        %v666 = vmax.f32 %v611, 0.0
        %v667 = vmax.f32 %v615, 0.0
        %v668 = vmax.f32 %v617, 0.0
        %v669 = vmax.f32 %v619, 0.0
        %v670 = vmax.f32 %v621, 0.0
        %v671 = vmax.f32 %v625, 0.0
        %v672 = vmax.f32 %v627, 0.0
        %v673 = vmax.f32 %v629, 0.0
        %v674 = vmax.f32 %v631, 0.0
        %v675 = vmax.f32 %v635, 0.0
        %v676 = vmax.f32 %v637, 0.0
        %v677 = vmax.f32 %v639, 0.0
        %v678 = vmax.f32 %v641, 0.0
        %v679 = vmax.f32 %v645, 0.0
        %v680 = vmax.f32 %v647, 0.0
        %v681 = vmax.f32 %v649, 0.0
        %v682 = vmax.f32 %v651, 0.0
        %v683 = vmax.f32 %v655, 0.0
        %v684 = vmax.f32 %v657, 0.0
        %v685 = vmax.f32 %v659, 0.0
        %v686 = vmax.f32 %v661, 0.0
        %v687 = vpack.c.bf16 %v665, %v663
        %v688 = vpack.c.bf16 %v666, %v664
        %v689 = vpack.c.bf16 %v669, %v667
        %v690 = vpack.c.bf16 %v670, %v668
        %v691 = vpack.c.bf16 %v673, %v671
        %v692 = vpack.c.bf16 %v674, %v672
        %v693 = vpack.c.bf16 %v677, %v675
        %v694 = vpack.c.bf16 %v678, %v676
        %v695 = vpack.c.bf16 %v681, %v679
        %v696 = vpack.c.bf16 %v682, %v680
        %v697 = vpack.c.bf16 %v685, %v683
        %v698 = vpack.c.bf16 %v686, %v684
        %700 = vset.pattern.permute.xlu0 0
        %701 = vperm.xlu0 %700, %v229
        %v702 = vpop.permute.xlu0 %701
        %705 = vset.pattern.permute.xlu0 0
        %706 = vperm.xlu0 %705, %v230
        %v707 = vpop.permute.xlu0 %706
        %710 = vset.pattern.permute.xlu0 0
        %711 = vperm.xlu0 %710, %v231
        %v712 = vpop.permute.xlu0 %711
        %715 = vset.pattern.permute.xlu0 0
        %716 = vperm.xlu0 %715, %v232
        %v717 = vpop.permute.xlu0 %716
        %720 = vset.pattern.permute.xlu0 0
        %721 = vperm.xlu0 %720, %v233
        %v722 = vpop.permute.xlu0 %721
        %725 = vset.pattern.permute.xlu0 0
        %726 = vperm.xlu0 %725, %v234
        %v727 = vpop.permute.xlu0 %726
        %730 = vset.pattern.permute.xlu0 0
        %731 = vperm.xlu0 %730, %v235
        %v732 = vpop.permute.xlu0 %731
        %735 = vset.pattern.permute.xlu0 0
        %736 = vperm.xlu0 %735, %v236
        %v737 = vpop.permute.xlu0 %736
        %v747 = vunpack.c.l.b16 %v196
        %v748 = vunpack.c.l.b16 %v197
        %v749 = vunpack.c.l.b16 %v198
        %v750 = vunpack.c.l.b16 %v199
        %v751 = vunpack.c.l.b16 %v200
        %v752 = vunpack.c.l.b16 %v201
        %v753 = vunpack.c.l.b16 %v202
        %v754 = vunpack.c.l.b16 %v203
        %v755 = vpack.c.b16 %v748, %v747
        %v756 = vpack.c.b16 %v750, %v749
        %v757 = vpack.c.b16 %v752, %v751
        %v758 = vpack.c.b16 %v754, %v753
        %vm759 = vcmask 785408
        %v761 = vsel %vm759, %v755, 0
        %v764 = vsel %vm759, %v756, 0
        %v767 = vsel %vm759, %v757, 0
        %v770 = vsel %vm759, %v758, 0
        %772 = vmatprep.subr.bf16.mxu0 %v688
        %773 = vmatpush1.bf16.msra.mxu0 %v687
        %774 = vmatprep.subr.bf16.mxu0 %v690
        %775 = vmatpush1.bf16.msra.mxu0 %v689
        %776 = vmatprep.subr.bf16.mxu0 %v692
        %777 = vmatpush1.bf16.msra.mxu0 %v691
        %778 = vmatprep.subr.bf16.mxu0 %v694
        %779 = vmatpush1.bf16.msra.mxu0 %v693
        %780 = vmatprep.subr.bf16.mxu0 %v696
        %781 = vmatpush1.bf16.msra.mxu0 %v695
        %782 = vmatprep.subr.bf16.mxu0 %v698
        %783 = vmatpush1.bf16.msra.mxu0 %v697
        %784 = vmatprep.subr.bf16.mxu0 0
        %785 = vmatpush1.bf16.msra.mxu0 0
        %786 = vmatprep.subr.bf16.mxu0 0
        %787 = vmatpush1.bf16.msra.mxu0 0
        %788 = vmatprep.subr.bf16.mxu0 0
        %789 = vmatpush1.bf16.msra.mxu0 0
        %790 = vmatprep.subr.bf16.mxu0 0
        %791 = vmatpush1.bf16.msra.mxu0 0
        %792 = vmatprep.subr.bf16.mxu0 0
        %793 = vmatpush1.bf16.msra.mxu0 0
        %794 = vmatprep.subr.bf16.mxu0 0
        %795 = vmatpush1.bf16.msra.mxu0 0
        %796 = vmatprep.subr.bf16.mxu0 0
        %797 = vmatpush1.bf16.msra.mxu0 0
        %798 = vmatprep.subr.bf16.mxu0 0
        %799 = vmatpush1.bf16.msra.mxu0 0
        %800 = vmatprep.subr.bf16.mxu0 0
        %801 = vmatpush1.bf16.msra.mxu0 0
        %802 = vmatprep.subr.bf16.mxu0 0
        %803 = vmatpush1.bf16.msra.mxu0 0
        %804 = vmatprep.mubr.bf16.mxu0 0
        %805 = vmatmul.mubr.bf16.gmra.mrb[0].mxu0 %v761
        %v806 = vpop.f32.mrb[0].mxu0
        %v807 = vadd.f32 %v702, %v806
        %v808 = vpop.f32.mrb[0].mxu0
        %v809 = vadd.f32 %v702, %v808
        %v810 = vpop.f32.mrb[0].mxu0
        %v811 = vadd.f32 %v707, %v810
        %v812 = vpop.f32.mrb[0].mxu0
        %v813 = vadd.f32 %v707, %v812
        %814 = vmatprep.mubr.bf16.mxu0 0
        %815 = vmatmul.mubr.bf16.gmra.mrb[0].mxu0 %v764
        %v816 = vpop.f32.mrb[0].mxu0
        %v817 = vadd.f32 %v712, %v816
        %v818 = vpop.f32.mrb[0].mxu0
        %v819 = vadd.f32 %v712, %v818
        %v820 = vpop.f32.mrb[0].mxu0
        %v821 = vadd.f32 %v717, %v820
        %v822 = vpop.f32.mrb[0].mxu0
        %v823 = vadd.f32 %v717, %v822
        %824 = vmatprep.mubr.bf16.mxu0 0
        %825 = vmatmul.mubr.bf16.gmra.mrb[0].mxu0 %v767
        %v826 = vpop.f32.mrb[0].mxu0
        %v827 = vadd.f32 %v722, %v826
        %v828 = vpop.f32.mrb[0].mxu0
        %v829 = vadd.f32 %v722, %v828
        %v830 = vpop.f32.mrb[0].mxu0
        %v831 = vadd.f32 %v727, %v830
        %v832 = vpop.f32.mrb[0].mxu0
        %v833 = vadd.f32 %v727, %v832
        %834 = vmatprep.mubr.bf16.mxu0 0
        %835 = vmatmul.mubr.bf16.gmra.mrb[0].mxu0 %v770
        %v836 = vpop.f32.mrb[0].mxu0
        %v837 = vadd.f32 %v732, %v836
        %v838 = vpop.f32.mrb[0].mxu0
        %v839 = vadd.f32 %v732, %v838
        %v840 = vpop.f32.mrb[0].mxu0
        %v841 = vadd.f32 %v737, %v840
        %v842 = vpop.f32.mrb[0].mxu0
        %v843 = vadd.f32 %v737, %v842
        %844 = vdwg.mxu0
        %v845 = vmax.f32 %v807, 0.0
        %v846 = vmax.f32 %v809, 0.0
        %v847 = vmax.f32 %v811, 0.0
        %v848 = vmax.f32 %v813, 0.0
        %v849 = vmax.f32 %v817, 0.0
        %v850 = vmax.f32 %v819, 0.0
        %v851 = vmax.f32 %v821, 0.0
        %v852 = vmax.f32 %v823, 0.0
        %v853 = vmax.f32 %v827, 0.0
        %v854 = vmax.f32 %v829, 0.0
        %v855 = vmax.f32 %v831, 0.0
        %v856 = vmax.f32 %v833, 0.0
        %v857 = vmax.f32 %v837, 0.0
        %v858 = vmax.f32 %v839, 0.0
        %v859 = vmax.f32 %v841, 0.0
        %v860 = vmax.f32 %v843, 0.0
        %v861 = vpack.c.bf16 %v847, %v845
        %v862 = vpack.c.bf16 %v848, %v846
        %v863 = vpack.c.bf16 %v851, %v849
        %v864 = vpack.c.bf16 %v852, %v850
        %v865 = vpack.c.bf16 %v855, %v853
        %v866 = vpack.c.bf16 %v856, %v854
        %v867 = vpack.c.bf16 %v859, %v857
        %v868 = vpack.c.bf16 %v860, %v858
        %870 = vset.pattern.permute.xlu0 0
        %871 = vperm.xlu0 %870, %v238
        %v872 = vpop.permute.xlu0 %871
        %vm874 = vcmask 523264
        %v876 = vsel %vm874, %v205, 0
        %878 = vmatprep.subr.bf16.mxu0 %v862
        %879 = vmatpush1.bf16.msra.mxu0 %v861
        %880 = vmatprep.subr.bf16.mxu0 %v864
        %881 = vmatpush1.bf16.msra.mxu0 %v863
        %882 = vmatprep.subr.bf16.mxu0 %v866
        %883 = vmatpush1.bf16.msra.mxu0 %v865
        %884 = vmatprep.subr.bf16.mxu0 %v868
        %885 = vmatpush1.bf16.msra.mxu0 %v867
        %886 = vmatprep.subr.bf16.mxu0 0
        %887 = vmatpush1.bf16.msra.mxu0 0
        %888 = vmatprep.subr.bf16.mxu0 0
        %889 = vmatpush1.bf16.msra.mxu0 0
        %890 = vmatprep.subr.bf16.mxu0 0
        %891 = vmatpush1.bf16.msra.mxu0 0
        %892 = vmatprep.subr.bf16.mxu0 0
        %893 = vmatpush1.bf16.msra.mxu0 0
        %894 = vmatprep.subr.bf16.mxu0 0
        %895 = vmatpush1.bf16.msra.mxu0 0
        %896 = vmatprep.subr.bf16.mxu0 0
        %897 = vmatpush1.bf16.msra.mxu0 0
        %898 = vmatprep.subr.bf16.mxu0 0
        %899 = vmatpush1.bf16.msra.mxu0 0
        %900 = vmatprep.subr.bf16.mxu0 0
        %901 = vmatpush1.bf16.msra.mxu0 0
        %902 = vmatprep.subr.bf16.mxu0 0
        %903 = vmatpush1.bf16.msra.mxu0 0
        %904 = vmatprep.subr.bf16.mxu0 0
        %905 = vmatpush1.bf16.msra.mxu0 0
        %906 = vmatprep.subr.bf16.mxu0 0
        %907 = vmatpush1.bf16.msra.mxu0 0
        %908 = vmatprep.subr.bf16.mxu0 0
        %909 = vmatpush1.bf16.msra.mxu0 0
        %910 = vmatprep.mubr.bf16.mxu0 0
        %911 = vmatmul.mubr.bf16.gmra.mrb[0].mxu0 %v876
        %v912 = vpop.f32.mrb[0].mxu0
        %v913 = vadd.f32 %v872, %v912
        %v914 = vpop.f32.mrb[0].mxu0
        %v915 = vadd.f32 %v872, %v914
        %v916 = vpop.f32.mrb[0].mxu0
        %v917 = vpop.f32.mrb[0].mxu0
        %918 = vdwg.mxu0
        %v921 = vcombine.low %v913, %v915
        %v923 = vunpack.c.l.s4 1983009808
        %v924 = vunpack.c.0.s8 %v923
        %v925 = vlaneseq
        %v926 = vshrl.u32 %v925, 7
        %v927 = vsub.s32 %v924, %v926
        %v928 = vrot.slane %v921, %v927
        %930 = vst [vmem:[%s164] sm:$0xf] %v928
        %s931 = scalar_lea.vmem %s169, 16
        %v932 = vld [vmem:[%s931] sm:$0x3f]
        %v933 = vld [vmem:[%s931 + $0x8] sm:$0x3f]
        %v934 = vpack.c.bf16 %v932, %v932
        %v935 = vpack.c.bf16 %v933, %v933
        %v937 = vsel %vm262, %v934, 0
        %v940 = vsel %vm262, %v935, 0
        %942 = vmatprep.subr.bf16.mxu0 %v940
        %943 = vmatpush1.bf16.msra.mxu0 %v937
        %944 = vmatprep.subr.bf16.mxu0 0
        %945 = vmatpush1.bf16.msra.mxu0 0
        %946 = vmatprep.subr.bf16.mxu0 0
        %947 = vmatpush1.bf16.msra.mxu0 0
        %948 = vmatprep.subr.bf16.mxu0 0
        %949 = vmatpush1.bf16.msra.mxu0 0
        %950 = vmatprep.subr.bf16.mxu0 0
        %951 = vmatpush1.bf16.msra.mxu0 0
        %952 = vmatprep.subr.bf16.mxu0 0
        %953 = vmatpush1.bf16.msra.mxu0 0
        %954 = vmatprep.subr.bf16.mxu0 0
        %955 = vmatpush1.bf16.msra.mxu0 0
        %956 = vmatprep.subr.bf16.mxu0 0
        %957 = vmatpush1.bf16.msra.mxu0 0
        %958 = vmatprep.subr.bf16.mxu0 0
        %959 = vmatpush1.bf16.msra.mxu0 0
        %960 = vmatprep.subr.bf16.mxu0 0
        %961 = vmatpush1.bf16.msra.mxu0 0
        %962 = vmatprep.subr.bf16.mxu0 0
        %963 = vmatpush1.bf16.msra.mxu0 0
        %964 = vmatprep.subr.bf16.mxu0 0
        %965 = vmatpush1.bf16.msra.mxu0 0
        %966 = vmatprep.subr.bf16.mxu0 0
        %967 = vmatpush1.bf16.msra.mxu0 0
        %968 = vmatprep.subr.bf16.mxu0 0
        %969 = vmatpush1.bf16.msra.mxu0 0
        %970 = vmatprep.subr.bf16.mxu0 0
        %971 = vmatpush1.bf16.msra.mxu0 0
        %972 = vmatprep.subr.bf16.mxu0 0
        %973 = vmatpush1.bf16.msra.mxu0 0
        %974 = vmatprep.mubr.bf16.mxu0 0
        %975 = vmatmul.mubr.bf16.gmra.mrb[0].mxu0 %v260
        %v976 = vpop.f32.mrb[0].mxu0
        %v977 = vadd.f32 %v246, %v976
        %v978 = vpop.f32.mrb[0].mxu0
        %v979 = vadd.f32 %v246, %v978
        %v980 = vpop.f32.mrb[0].mxu0
        %v981 = vadd.f32 %v251, %v980
        %v982 = vpop.f32.mrb[0].mxu0
        %v983 = vadd.f32 %v251, %v982
        %984 = vdwg.mxu0
        %v985 = vmax.f32 %v977, 0.0
        %v986 = vmax.f32 %v979, 0.0
        %v987 = vmax.f32 %v981, 0.0
        %v988 = vmax.f32 %v983, 0.0
        %v989 = vpack.c.bf16 %v987, %v985
        %v990 = vpack.c.bf16 %v988, %v986
        %v992 = vsel %vm373, %v989, 0
        %v995 = vsel %vm373, %v990, 0
        %997 = vmatprep.subr.bf16.mxu0 %v995
        %998 = vmatpush1.bf16.msra.mxu0 %v992
        %999 = vmatprep.subr.bf16.mxu0 0
        %1000 = vmatpush1.bf16.msra.mxu0 0
        %1001 = vmatprep.subr.bf16.mxu0 0
        %1002 = vmatpush1.bf16.msra.mxu0 0
        %1003 = vmatprep.subr.bf16.mxu0 0
        %1004 = vmatpush1.bf16.msra.mxu0 0
        %1005 = vmatprep.subr.bf16.mxu0 0
        %1006 = vmatpush1.bf16.msra.mxu0 0
        %1007 = vmatprep.subr.bf16.mxu0 0
        %1008 = vmatpush1.bf16.msra.mxu0 0
        %1009 = vmatprep.subr.bf16.mxu0 0
        %1010 = vmatpush1.bf16.msra.mxu0 0
        %1011 = vmatprep.subr.bf16.mxu0 0
        %1012 = vmatpush1.bf16.msra.mxu0 0
        %1013 = vmatprep.subr.bf16.mxu0 0
        %1014 = vmatpush1.bf16.msra.mxu0 0
        %1015 = vmatprep.subr.bf16.mxu0 0
        %1016 = vmatpush1.bf16.msra.mxu0 0
        %1017 = vmatprep.subr.bf16.mxu0 0
        %1018 = vmatpush1.bf16.msra.mxu0 0
        %1019 = vmatprep.subr.bf16.mxu0 0
        %1020 = vmatpush1.bf16.msra.mxu0 0
        %1021 = vmatprep.subr.bf16.mxu0 0
        %1022 = vmatpush1.bf16.msra.mxu0 0
        %1023 = vmatprep.subr.bf16.mxu0 0
        %1024 = vmatpush1.bf16.msra.mxu0 0
        %1025 = vmatprep.subr.bf16.mxu0 0
        %1026 = vmatpush1.bf16.msra.mxu0 0
        %1027 = vmatprep.subr.bf16.mxu0 0
        %1028 = vmatpush1.bf16.msra.mxu0 0
        %1029 = vmatprep.mubr.bf16.mxu0 0
        %1030 = vmatmul.mubr.bf16.gmra.mrb[0].mxu0 %v365
        %v1031 = vpop.f32.mrb[0].mxu0
        %v1032 = vadd.f32 %v321, %v1031
        %v1033 = vpop.f32.mrb[0].mxu0
        %v1034 = vadd.f32 %v321, %v1033
        %v1035 = vpop.f32.mrb[0].mxu0
        %v1036 = vadd.f32 %v326, %v1035
        %v1037 = vpop.f32.mrb[0].mxu0
        %v1038 = vadd.f32 %v326, %v1037
        %1039 = vmatprep.mubr.bf16.mxu0 0
        %1040 = vmatmul.mubr.bf16.gmra.mrb[0].mxu0 %v368
        %v1041 = vpop.f32.mrb[0].mxu0
        %v1042 = vadd.f32 %v331, %v1041
        %v1043 = vpop.f32.mrb[0].mxu0
        %v1044 = vadd.f32 %v331, %v1043
        %v1045 = vpop.f32.mrb[0].mxu0
        %v1046 = vadd.f32 %v336, %v1045
        %v1047 = vpop.f32.mrb[0].mxu0
        %v1048 = vadd.f32 %v336, %v1047
        %1049 = vmatprep.mubr.bf16.mxu0 0
        %1050 = vmatmul.mubr.bf16.gmra.mrb[0].mxu0 %v371
        %v1051 = vpop.f32.mrb[0].mxu0
        %v1052 = vadd.f32 %v341, %v1051
        %v1053 = vpop.f32.mrb[0].mxu0
        %v1054 = vadd.f32 %v341, %v1053
        %v1055 = vpop.f32.mrb[0].mxu0
        %v1056 = vadd.f32 %v346, %v1055
        %v1057 = vpop.f32.mrb[0].mxu0
        %v1058 = vadd.f32 %v346, %v1057
        %1059 = vdwg.mxu0
        %v1060 = vmax.f32 %v1032, 0.0
        %v1061 = vmax.f32 %v1034, 0.0
        %v1062 = vmax.f32 %v1036, 0.0
        %v1063 = vmax.f32 %v1038, 0.0
        %v1064 = vmax.f32 %v1042, 0.0
        %v1065 = vmax.f32 %v1044, 0.0
        %v1066 = vmax.f32 %v1046, 0.0
        %v1067 = vmax.f32 %v1048, 0.0
        %v1068 = vmax.f32 %v1052, 0.0
        %v1069 = vmax.f32 %v1054, 0.0
        %v1070 = vmax.f32 %v1056, 0.0
        %v1071 = vmax.f32 %v1058, 0.0
        %v1072 = vpack.c.bf16 %v1062, %v1060
        %v1073 = vpack.c.bf16 %v1063, %v1061
        %v1074 = vpack.c.bf16 %v1066, %v1064
        %v1075 = vpack.c.bf16 %v1067, %v1065
        %v1076 = vpack.c.bf16 %v1070, %v1068
        %v1077 = vpack.c.bf16 %v1071, %v1069
        %1078 = vmatprep.subr.bf16.mxu0 %v1073
        %1079 = vmatpush1.bf16.msra.mxu0 %v1072
        %1080 = vmatprep.subr.bf16.mxu0 %v1075
        %1081 = vmatpush1.bf16.msra.mxu0 %v1074
        %1082 = vmatprep.subr.bf16.mxu0 %v1077
        %1083 = vmatpush1.bf16.msra.mxu0 %v1076
        %1084 = vmatprep.subr.bf16.mxu0 0
        %1085 = vmatpush1.bf16.msra.mxu0 0
        %1086 = vmatprep.subr.bf16.mxu0 0
        %1087 = vmatpush1.bf16.msra.mxu0 0
        %1088 = vmatprep.subr.bf16.mxu0 0
        %1089 = vmatpush1.bf16.msra.mxu0 0
        %1090 = vmatprep.subr.bf16.mxu0 0
        %1091 = vmatpush1.bf16.msra.mxu0 0
        %1092 = vmatprep.subr.bf16.mxu0 0
        %1093 = vmatpush1.bf16.msra.mxu0 0
        %1094 = vmatprep.subr.bf16.mxu0 0
        %1095 = vmatpush1.bf16.msra.mxu0 0
        %1096 = vmatprep.subr.bf16.mxu0 0
        %1097 = vmatpush1.bf16.msra.mxu0 0
        %1098 = vmatprep.subr.bf16.mxu0 0
        %1099 = vmatpush1.bf16.msra.mxu0 0
        %1100 = vmatprep.subr.bf16.mxu0 0
        %1101 = vmatpush1.bf16.msra.mxu0 0
        %1102 = vmatprep.subr.bf16.mxu0 0
        %1103 = vmatpush1.bf16.msra.mxu0 0
        %1104 = vmatprep.subr.bf16.mxu0 0
        %1105 = vmatpush1.bf16.msra.mxu0 0
        %1106 = vmatprep.subr.bf16.mxu0 0
        %1107 = vmatpush1.bf16.msra.mxu0 0
        %1108 = vmatprep.subr.bf16.mxu0 0
        %1109 = vmatpush1.bf16.msra.mxu0 0
        %1110 = vmatprep.mubr.bf16.mxu0 0
        %1111 = vmatmul.mubr.bf16.gmra.mrb[0].mxu0 %v553
        %v1112 = vpop.f32.mrb[0].mxu0
        %v1113 = vadd.f32 %v464, %v1112
        %v1114 = vpop.f32.mrb[0].mxu0
        %v1115 = vadd.f32 %v464, %v1114
        %v1116 = vpop.f32.mrb[0].mxu0
        %v1117 = vadd.f32 %v469, %v1116
        %v1118 = vpop.f32.mrb[0].mxu0
        %v1119 = vadd.f32 %v469, %v1118
        %1120 = vmatprep.mubr.bf16.mxu0 0
        %1121 = vmatmul.mubr.bf16.gmra.mrb[0].mxu0 %v556
        %v1122 = vpop.f32.mrb[0].mxu0
        %v1123 = vadd.f32 %v474, %v1122
        %v1124 = vpop.f32.mrb[0].mxu0
        %v1125 = vadd.f32 %v474, %v1124
        %v1126 = vpop.f32.mrb[0].mxu0
        %v1127 = vadd.f32 %v479, %v1126
        %v1128 = vpop.f32.mrb[0].mxu0
        %v1129 = vadd.f32 %v479, %v1128
        %1130 = vmatprep.mubr.bf16.mxu0 0
        %1131 = vmatmul.mubr.bf16.gmra.mrb[0].mxu0 %v559
        %v1132 = vpop.f32.mrb[0].mxu0
        %v1133 = vadd.f32 %v484, %v1132
        %v1134 = vpop.f32.mrb[0].mxu0
        %v1135 = vadd.f32 %v484, %v1134
        %v1136 = vpop.f32.mrb[0].mxu0
        %v1137 = vadd.f32 %v489, %v1136
        %v1138 = vpop.f32.mrb[0].mxu0
        %v1139 = vadd.f32 %v489, %v1138
        %1140 = vmatprep.mubr.bf16.mxu0 0
        %1141 = vmatmul.mubr.bf16.gmra.mrb[0].mxu0 %v562
        %v1142 = vpop.f32.mrb[0].mxu0
        %v1143 = vadd.f32 %v494, %v1142
        %v1144 = vpop.f32.mrb[0].mxu0
        %v1145 = vadd.f32 %v494, %v1144
        %v1146 = vpop.f32.mrb[0].mxu0
        %v1147 = vadd.f32 %v499, %v1146
        %v1148 = vpop.f32.mrb[0].mxu0
        %v1149 = vadd.f32 %v499, %v1148
        %1150 = vmatprep.mubr.bf16.mxu0 0
        %1151 = vmatmul.mubr.bf16.gmra.mrb[0].mxu0 %v565
        %v1152 = vpop.f32.mrb[0].mxu0
        %v1153 = vadd.f32 %v504, %v1152
        %v1154 = vpop.f32.mrb[0].mxu0
        %v1155 = vadd.f32 %v504, %v1154
        %v1156 = vpop.f32.mrb[0].mxu0
        %v1157 = vadd.f32 %v509, %v1156
        %v1158 = vpop.f32.mrb[0].mxu0
        %v1159 = vadd.f32 %v509, %v1158
        %1160 = vmatprep.mubr.bf16.mxu0 0
        %1161 = vmatmul.mubr.bf16.gmra.mrb[0].mxu0 %v568
        %v1162 = vpop.f32.mrb[0].mxu0
        %v1163 = vadd.f32 %v514, %v1162
        %v1164 = vpop.f32.mrb[0].mxu0
        %v1165 = vadd.f32 %v514, %v1164
        %v1166 = vpop.f32.mrb[0].mxu0
        %v1167 = vadd.f32 %v519, %v1166
        %v1168 = vpop.f32.mrb[0].mxu0
        %v1169 = vadd.f32 %v519, %v1168
        %1170 = vdwg.mxu0
        %v1171 = vmax.f32 %v1113, 0.0
        %v1172 = vmax.f32 %v1115, 0.0
        %v1173 = vmax.f32 %v1117, 0.0
        %v1174 = vmax.f32 %v1119, 0.0
        %v1175 = vmax.f32 %v1123, 0.0
        %v1176 = vmax.f32 %v1125, 0.0
        %v1177 = vmax.f32 %v1127, 0.0
        %v1178 = vmax.f32 %v1129, 0.0
        %v1179 = vmax.f32 %v1133, 0.0
        %v1180 = vmax.f32 %v1135, 0.0
        %v1181 = vmax.f32 %v1137, 0.0
        %v1182 = vmax.f32 %v1139, 0.0
        %v1183 = vmax.f32 %v1143, 0.0
        %v1184 = vmax.f32 %v1145, 0.0
        %v1185 = vmax.f32 %v1147, 0.0
        %v1186 = vmax.f32 %v1149, 0.0
        %v1187 = vmax.f32 %v1153, 0.0
        %v1188 = vmax.f32 %v1155, 0.0
        %v1189 = vmax.f32 %v1157, 0.0
        %v1190 = vmax.f32 %v1159, 0.0
        %v1191 = vmax.f32 %v1163, 0.0
        %v1192 = vmax.f32 %v1165, 0.0
        %v1193 = vmax.f32 %v1167, 0.0
        %v1194 = vmax.f32 %v1169, 0.0
        %v1195 = vpack.c.bf16 %v1173, %v1171
        %v1196 = vpack.c.bf16 %v1174, %v1172
        %v1197 = vpack.c.bf16 %v1177, %v1175
        %v1198 = vpack.c.bf16 %v1178, %v1176
        %v1199 = vpack.c.bf16 %v1181, %v1179
        %v1200 = vpack.c.bf16 %v1182, %v1180
        %v1201 = vpack.c.bf16 %v1185, %v1183
        %v1202 = vpack.c.bf16 %v1186, %v1184
        %v1203 = vpack.c.bf16 %v1189, %v1187
        %v1204 = vpack.c.bf16 %v1190, %v1188
        %v1205 = vpack.c.bf16 %v1193, %v1191
        %v1206 = vpack.c.bf16 %v1194, %v1192
        %1207 = vmatprep.subr.bf16.mxu0 %v1196
        %1208 = vmatpush1.bf16.msra.mxu0 %v1195
        %1209 = vmatprep.subr.bf16.mxu0 %v1198
        %1210 = vmatpush1.bf16.msra.mxu0 %v1197
        %1211 = vmatprep.subr.bf16.mxu0 %v1200
        %1212 = vmatpush1.bf16.msra.mxu0 %v1199
        %1213 = vmatprep.subr.bf16.mxu0 %v1202
        %1214 = vmatpush1.bf16.msra.mxu0 %v1201
        %1215 = vmatprep.subr.bf16.mxu0 %v1204
        %1216 = vmatpush1.bf16.msra.mxu0 %v1203
        %1217 = vmatprep.subr.bf16.mxu0 %v1206
        %1218 = vmatpush1.bf16.msra.mxu0 %v1205
        %1219 = vmatprep.subr.bf16.mxu0 0
        %1220 = vmatpush1.bf16.msra.mxu0 0
        %1221 = vmatprep.subr.bf16.mxu0 0
        %1222 = vmatpush1.bf16.msra.mxu0 0
        %1223 = vmatprep.subr.bf16.mxu0 0
        %1224 = vmatpush1.bf16.msra.mxu0 0
        %1225 = vmatprep.subr.bf16.mxu0 0
        %1226 = vmatpush1.bf16.msra.mxu0 0
        %1227 = vmatprep.subr.bf16.mxu0 0
        %1228 = vmatpush1.bf16.msra.mxu0 0
        %1229 = vmatprep.subr.bf16.mxu0 0
        %1230 = vmatpush1.bf16.msra.mxu0 0
        %1231 = vmatprep.subr.bf16.mxu0 0
        %1232 = vmatpush1.bf16.msra.mxu0 0
        %1233 = vmatprep.subr.bf16.mxu0 0
        %1234 = vmatpush1.bf16.msra.mxu0 0
        %1235 = vmatprep.subr.bf16.mxu0 0
        %1236 = vmatpush1.bf16.msra.mxu0 0
        %1237 = vmatprep.subr.bf16.mxu0 0
        %1238 = vmatpush1.bf16.msra.mxu0 0
        %1239 = vmatprep.mubr.bf16.mxu0 0
        %1240 = vmatmul.mubr.bf16.gmra.mrb[0].mxu0 %v761
        %v1241 = vpop.f32.mrb[0].mxu0
        %v1242 = vadd.f32 %v702, %v1241
        %v1243 = vpop.f32.mrb[0].mxu0
        %v1244 = vadd.f32 %v702, %v1243
        %v1245 = vpop.f32.mrb[0].mxu0
        %v1246 = vadd.f32 %v707, %v1245
        %v1247 = vpop.f32.mrb[0].mxu0
        %v1248 = vadd.f32 %v707, %v1247
        %1249 = vmatprep.mubr.bf16.mxu0 0
        %1250 = vmatmul.mubr.bf16.gmra.mrb[0].mxu0 %v764
        %v1251 = vpop.f32.mrb[0].mxu0
        %v1252 = vadd.f32 %v712, %v1251
        %v1253 = vpop.f32.mrb[0].mxu0
        %v1254 = vadd.f32 %v712, %v1253
        %v1255 = vpop.f32.mrb[0].mxu0
        %v1256 = vadd.f32 %v717, %v1255
        %v1257 = vpop.f32.mrb[0].mxu0
        %v1258 = vadd.f32 %v717, %v1257
        %1259 = vmatprep.mubr.bf16.mxu0 0
        %1260 = vmatmul.mubr.bf16.gmra.mrb[0].mxu0 %v767
        %v1261 = vpop.f32.mrb[0].mxu0
        %v1262 = vadd.f32 %v722, %v1261
        %v1263 = vpop.f32.mrb[0].mxu0
        %v1264 = vadd.f32 %v722, %v1263
        %v1265 = vpop.f32.mrb[0].mxu0
        %v1266 = vadd.f32 %v727, %v1265
        %v1267 = vpop.f32.mrb[0].mxu0
        %v1268 = vadd.f32 %v727, %v1267
        %1269 = vmatprep.mubr.bf16.mxu0 0
        %1270 = vmatmul.mubr.bf16.gmra.mrb[0].mxu0 %v770
        %v1271 = vpop.f32.mrb[0].mxu0
        %v1272 = vadd.f32 %v732, %v1271
        %v1273 = vpop.f32.mrb[0].mxu0
        %v1274 = vadd.f32 %v732, %v1273
        %v1275 = vpop.f32.mrb[0].mxu0
        %v1276 = vadd.f32 %v737, %v1275
        %v1277 = vpop.f32.mrb[0].mxu0
        %v1278 = vadd.f32 %v737, %v1277
        %1279 = vdwg.mxu0
        %v1280 = vmax.f32 %v1242, 0.0
        %v1281 = vmax.f32 %v1244, 0.0
        %v1282 = vmax.f32 %v1246, 0.0
        %v1283 = vmax.f32 %v1248, 0.0
        %v1284 = vmax.f32 %v1252, 0.0
        %v1285 = vmax.f32 %v1254, 0.0
        %v1286 = vmax.f32 %v1256, 0.0
        %v1287 = vmax.f32 %v1258, 0.0
        %v1288 = vmax.f32 %v1262, 0.0
        %v1289 = vmax.f32 %v1264, 0.0
        %v1290 = vmax.f32 %v1266, 0.0
        %v1291 = vmax.f32 %v1268, 0.0
        %v1292 = vmax.f32 %v1272, 0.0
        %v1293 = vmax.f32 %v1274, 0.0
        %v1294 = vmax.f32 %v1276, 0.0
        %v1295 = vmax.f32 %v1278, 0.0
        %v1296 = vpack.c.bf16 %v1282, %v1280
        %v1297 = vpack.c.bf16 %v1283, %v1281
        %v1298 = vpack.c.bf16 %v1286, %v1284
        %v1299 = vpack.c.bf16 %v1287, %v1285
        %v1300 = vpack.c.bf16 %v1290, %v1288
        %v1301 = vpack.c.bf16 %v1291, %v1289
        %v1302 = vpack.c.bf16 %v1294, %v1292
        %v1303 = vpack.c.bf16 %v1295, %v1293
        %1304 = vmatprep.subr.bf16.mxu0 %v1297
        %1305 = vmatpush1.bf16.msra.mxu0 %v1296
        %1306 = vmatprep.subr.bf16.mxu0 %v1299
        %1307 = vmatpush1.bf16.msra.mxu0 %v1298
        %1308 = vmatprep.subr.bf16.mxu0 %v1301
        %1309 = vmatpush1.bf16.msra.mxu0 %v1300
        %1310 = vmatprep.subr.bf16.mxu0 %v1303
        %1311 = vmatpush1.bf16.msra.mxu0 %v1302
        %1312 = vmatprep.subr.bf16.mxu0 0
        %1313 = vmatpush1.bf16.msra.mxu0 0
        %1314 = vmatprep.subr.bf16.mxu0 0
        %1315 = vmatpush1.bf16.msra.mxu0 0
        %1316 = vmatprep.subr.bf16.mxu0 0
        %1317 = vmatpush1.bf16.msra.mxu0 0
        %1318 = vmatprep.subr.bf16.mxu0 0
        %1319 = vmatpush1.bf16.msra.mxu0 0
        %1320 = vmatprep.subr.bf16.mxu0 0
        %1321 = vmatpush1.bf16.msra.mxu0 0
        %1322 = vmatprep.subr.bf16.mxu0 0
        %1323 = vmatpush1.bf16.msra.mxu0 0
        %1324 = vmatprep.subr.bf16.mxu0 0
        %1325 = vmatpush1.bf16.msra.mxu0 0
        %1326 = vmatprep.subr.bf16.mxu0 0
        %1327 = vmatpush1.bf16.msra.mxu0 0
        %1328 = vmatprep.subr.bf16.mxu0 0
        %1329 = vmatpush1.bf16.msra.mxu0 0
        %1330 = vmatprep.subr.bf16.mxu0 0
        %1331 = vmatpush1.bf16.msra.mxu0 0
        %1332 = vmatprep.subr.bf16.mxu0 0
        %1333 = vmatpush1.bf16.msra.mxu0 0
        %1334 = vmatprep.subr.bf16.mxu0 0
        %1335 = vmatpush1.bf16.msra.mxu0 0
        %1336 = vmatprep.mubr.bf16.mxu0 0
        %1337 = vmatmul.mubr.bf16.gmra.mrb[0].mxu0 %v876
        %v1338 = vpop.f32.mrb[0].mxu0
        %v1339 = vadd.f32 %v872, %v1338
        %v1340 = vpop.f32.mrb[0].mxu0
        %v1341 = vadd.f32 %v872, %v1340
        %v1342 = vpop.f32.mrb[0].mxu0
        %v1343 = vpop.f32.mrb[0].mxu0
        %1344 = vdwg.mxu0
        %v1347 = vcombine.low %v1339, %v1341
        %v1349 = vunpack.c.l.s4 1983009808
        %v1350 = vunpack.c.0.s8 %v1349
        %v1351 = vlaneseq
        %v1352 = vshrl.u32 %v1351, 7
        %v1353 = vsub.s32 %v1350, %v1352
        %v1354 = vrot.slane %v1347, %v1353
        %s1356 = scalar_lea.vmem %s164, 4 [#allocation2]
        %1357 = vst [vmem:[%s1356] sm:$0xf] %v1354
        %s1358 = scalar_lea.vmem %s169, 32
        %v1359 = vld [vmem:[%s1358] sm:$0x3f]
        %v1360 = vld [vmem:[%s1358 + $0x8] sm:$0x3f]
        %v1361 = vpack.c.bf16 %v1359, %v1359
        %v1362 = vpack.c.bf16 %v1360, %v1360
        %v1364 = vsel %vm262, %v1361, 0
        %v1367 = vsel %vm262, %v1362, 0
        %1369 = vmatprep.subr.bf16.mxu0 %v1367
        %1370 = vmatpush1.bf16.msra.mxu0 %v1364
        %1371 = vmatprep.subr.bf16.mxu0 0
        %1372 = vmatpush1.bf16.msra.mxu0 0
        %1373 = vmatprep.subr.bf16.mxu0 0
        %1374 = vmatpush1.bf16.msra.mxu0 0
        %1375 = vmatprep.subr.bf16.mxu0 0
        %1376 = vmatpush1.bf16.msra.mxu0 0
        %1377 = vmatprep.subr.bf16.mxu0 0
        %1378 = vmatpush1.bf16.msra.mxu0 0
        %1379 = vmatprep.subr.bf16.mxu0 0
        %1380 = vmatpush1.bf16.msra.mxu0 0
        %1381 = vmatprep.subr.bf16.mxu0 0
        %1382 = vmatpush1.bf16.msra.mxu0 0
        %1383 = vmatprep.subr.bf16.mxu0 0
        %1384 = vmatpush1.bf16.msra.mxu0 0
        %1385 = vmatprep.subr.bf16.mxu0 0
        %1386 = vmatpush1.bf16.msra.mxu0 0
        %1387 = vmatprep.subr.bf16.mxu0 0
        %1388 = vmatpush1.bf16.msra.mxu0 0
        %1389 = vmatprep.subr.bf16.mxu0 0
        %1390 = vmatpush1.bf16.msra.mxu0 0
        %1391 = vmatprep.subr.bf16.mxu0 0
        %1392 = vmatpush1.bf16.msra.mxu0 0
        %1393 = vmatprep.subr.bf16.mxu0 0
        %1394 = vmatpush1.bf16.msra.mxu0 0
        %1395 = vmatprep.subr.bf16.mxu0 0
        %1396 = vmatpush1.bf16.msra.mxu0 0
        %1397 = vmatprep.subr.bf16.mxu0 0
        %1398 = vmatpush1.bf16.msra.mxu0 0
        %1399 = vmatprep.subr.bf16.mxu0 0
        %1400 = vmatpush1.bf16.msra.mxu0 0
        %1401 = vmatprep.mubr.bf16.mxu0 0
        %1402 = vmatmul.mubr.bf16.gmra.mrb[0].mxu0 %v260
        %v1403 = vpop.f32.mrb[0].mxu0
        %v1404 = vadd.f32 %v246, %v1403
        %v1405 = vpop.f32.mrb[0].mxu0
        %v1406 = vadd.f32 %v246, %v1405
        %v1407 = vpop.f32.mrb[0].mxu0
        %v1408 = vadd.f32 %v251, %v1407
        %v1409 = vpop.f32.mrb[0].mxu0
        %v1410 = vadd.f32 %v251, %v1409
        %1411 = vdwg.mxu0
        %v1412 = vmax.f32 %v1404, 0.0
        %v1413 = vmax.f32 %v1406, 0.0
        %v1414 = vmax.f32 %v1408, 0.0
        %v1415 = vmax.f32 %v1410, 0.0
        %v1416 = vpack.c.bf16 %v1414, %v1412
        %v1417 = vpack.c.bf16 %v1415, %v1413
        %v1419 = vsel %vm373, %v1416, 0
        %v1422 = vsel %vm373, %v1417, 0
        %1424 = vmatprep.subr.bf16.mxu0 %v1422
        %1425 = vmatpush1.bf16.msra.mxu0 %v1419
        %1426 = vmatprep.subr.bf16.mxu0 0
        %1427 = vmatpush1.bf16.msra.mxu0 0
        %1428 = vmatprep.subr.bf16.mxu0 0
        %1429 = vmatpush1.bf16.msra.mxu0 0
        %1430 = vmatprep.subr.bf16.mxu0 0
        %1431 = vmatpush1.bf16.msra.mxu0 0
        %1432 = vmatprep.subr.bf16.mxu0 0
        %1433 = vmatpush1.bf16.msra.mxu0 0
        %1434 = vmatprep.subr.bf16.mxu0 0
        %1435 = vmatpush1.bf16.msra.mxu0 0
        %1436 = vmatprep.subr.bf16.mxu0 0
        %1437 = vmatpush1.bf16.msra.mxu0 0
        %1438 = vmatprep.subr.bf16.mxu0 0
        %1439 = vmatpush1.bf16.msra.mxu0 0
        %1440 = vmatprep.subr.bf16.mxu0 0
        %1441 = vmatpush1.bf16.msra.mxu0 0
        %1442 = vmatprep.subr.bf16.mxu0 0
        %1443 = vmatpush1.bf16.msra.mxu0 0
        %1444 = vmatprep.subr.bf16.mxu0 0
        %1445 = vmatpush1.bf16.msra.mxu0 0
        %1446 = vmatprep.subr.bf16.mxu0 0
        %1447 = vmatpush1.bf16.msra.mxu0 0
        %1448 = vmatprep.subr.bf16.mxu0 0
        %1449 = vmatpush1.bf16.msra.mxu0 0
        %1450 = vmatprep.subr.bf16.mxu0 0
        %1451 = vmatpush1.bf16.msra.mxu0 0
        %1452 = vmatprep.subr.bf16.mxu0 0
        %1453 = vmatpush1.bf16.msra.mxu0 0
        %1454 = vmatprep.subr.bf16.mxu0 0
        %1455 = vmatpush1.bf16.msra.mxu0 0
        %1456 = vmatprep.mubr.bf16.mxu0 0
        %1457 = vmatmul.mubr.bf16.gmra.mrb[0].mxu0 %v365
        %v1458 = vpop.f32.mrb[0].mxu0
        %v1459 = vadd.f32 %v321, %v1458
        %v1460 = vpop.f32.mrb[0].mxu0
        %v1461 = vadd.f32 %v321, %v1460
        %v1462 = vpop.f32.mrb[0].mxu0
        %v1463 = vadd.f32 %v326, %v1462
        %v1464 = vpop.f32.mrb[0].mxu0
        %v1465 = vadd.f32 %v326, %v1464
        %1466 = vmatprep.mubr.bf16.mxu0 0
        %1467 = vmatmul.mubr.bf16.gmra.mrb[0].mxu0 %v368
        %v1468 = vpop.f32.mrb[0].mxu0
        %v1469 = vadd.f32 %v331, %v1468
        %v1470 = vpop.f32.mrb[0].mxu0
        %v1471 = vadd.f32 %v331, %v1470
        %v1472 = vpop.f32.mrb[0].mxu0
        %v1473 = vadd.f32 %v336, %v1472
        %v1474 = vpop.f32.mrb[0].mxu0
        %v1475 = vadd.f32 %v336, %v1474
        %1476 = vmatprep.mubr.bf16.mxu0 0
        %1477 = vmatmul.mubr.bf16.gmra.mrb[0].mxu0 %v371
        %v1478 = vpop.f32.mrb[0].mxu0
        %v1479 = vadd.f32 %v341, %v1478
        %v1480 = vpop.f32.mrb[0].mxu0
        %v1481 = vadd.f32 %v341, %v1480
        %v1482 = vpop.f32.mrb[0].mxu0
        %v1483 = vadd.f32 %v346, %v1482
        %v1484 = vpop.f32.mrb[0].mxu0
        %v1485 = vadd.f32 %v346, %v1484
        %1486 = vdwg.mxu0
        %v1487 = vmax.f32 %v1459, 0.0
        %v1488 = vmax.f32 %v1461, 0.0
        %v1489 = vmax.f32 %v1463, 0.0
        %v1490 = vmax.f32 %v1465, 0.0
        %v1491 = vmax.f32 %v1469, 0.0
        %v1492 = vmax.f32 %v1471, 0.0
        %v1493 = vmax.f32 %v1473, 0.0
        %v1494 = vmax.f32 %v1475, 0.0
        %v1495 = vmax.f32 %v1479, 0.0
        %v1496 = vmax.f32 %v1481, 0.0
        %v1497 = vmax.f32 %v1483, 0.0
        %v1498 = vmax.f32 %v1485, 0.0
        %v1499 = vpack.c.bf16 %v1489, %v1487
        %v1500 = vpack.c.bf16 %v1490, %v1488
        %v1501 = vpack.c.bf16 %v1493, %v1491
        %v1502 = vpack.c.bf16 %v1494, %v1492
        %v1503 = vpack.c.bf16 %v1497, %v1495
        %v1504 = vpack.c.bf16 %v1498, %v1496
        %1505 = vmatprep.subr.bf16.mxu0 %v1500
        %1506 = vmatpush1.bf16.msra.mxu0 %v1499
        %1507 = vmatprep.subr.bf16.mxu0 %v1502
        %1508 = vmatpush1.bf16.msra.mxu0 %v1501
        %1509 = vmatprep.subr.bf16.mxu0 %v1504
        %1510 = vmatpush1.bf16.msra.mxu0 %v1503
        %1511 = vmatprep.subr.bf16.mxu0 0
        %1512 = vmatpush1.bf16.msra.mxu0 0
        %1513 = vmatprep.subr.bf16.mxu0 0
        %1514 = vmatpush1.bf16.msra.mxu0 0
        %1515 = vmatprep.subr.bf16.mxu0 0
        %1516 = vmatpush1.bf16.msra.mxu0 0
        %1517 = vmatprep.subr.bf16.mxu0 0
        %1518 = vmatpush1.bf16.msra.mxu0 0
        %1519 = vmatprep.subr.bf16.mxu0 0
        %1520 = vmatpush1.bf16.msra.mxu0 0
        %1521 = vmatprep.subr.bf16.mxu0 0
        %1522 = vmatpush1.bf16.msra.mxu0 0
        %1523 = vmatprep.subr.bf16.mxu0 0
        %1524 = vmatpush1.bf16.msra.mxu0 0
        %1525 = vmatprep.subr.bf16.mxu0 0
        %1526 = vmatpush1.bf16.msra.mxu0 0
        %1527 = vmatprep.subr.bf16.mxu0 0
        %1528 = vmatpush1.bf16.msra.mxu0 0
        %1529 = vmatprep.subr.bf16.mxu0 0
        %1530 = vmatpush1.bf16.msra.mxu0 0
        %1531 = vmatprep.subr.bf16.mxu0 0
        %1532 = vmatpush1.bf16.msra.mxu0 0
        %1533 = vmatprep.subr.bf16.mxu0 0
        %1534 = vmatpush1.bf16.msra.mxu0 0
        %1535 = vmatprep.subr.bf16.mxu0 0
        %1536 = vmatpush1.bf16.msra.mxu0 0
        %1537 = vmatprep.mubr.bf16.mxu0 0
        %1538 = vmatmul.mubr.bf16.gmra.mrb[0].mxu0 %v553
        %v1539 = vpop.f32.mrb[0].mxu0
        %v1540 = vadd.f32 %v464, %v1539
        %v1541 = vpop.f32.mrb[0].mxu0
        %v1542 = vadd.f32 %v464, %v1541
        %v1543 = vpop.f32.mrb[0].mxu0
        %v1544 = vadd.f32 %v469, %v1543
        %v1545 = vpop.f32.mrb[0].mxu0
        %v1546 = vadd.f32 %v469, %v1545
        %1547 = vmatprep.mubr.bf16.mxu0 0
        %1548 = vmatmul.mubr.bf16.gmra.mrb[0].mxu0 %v556
        %v1549 = vpop.f32.mrb[0].mxu0
        %v1550 = vadd.f32 %v474, %v1549
        %v1551 = vpop.f32.mrb[0].mxu0
        %v1552 = vadd.f32 %v474, %v1551
        %v1553 = vpop.f32.mrb[0].mxu0
        %v1554 = vadd.f32 %v479, %v1553
        %v1555 = vpop.f32.mrb[0].mxu0
        %v1556 = vadd.f32 %v479, %v1555
        %1557 = vmatprep.mubr.bf16.mxu0 0
        %1558 = vmatmul.mubr.bf16.gmra.mrb[0].mxu0 %v559
        %v1559 = vpop.f32.mrb[0].mxu0
        %v1560 = vadd.f32 %v484, %v1559
        %v1561 = vpop.f32.mrb[0].mxu0
        %v1562 = vadd.f32 %v484, %v1561
        %v1563 = vpop.f32.mrb[0].mxu0
        %v1564 = vadd.f32 %v489, %v1563
        %v1565 = vpop.f32.mrb[0].mxu0
        %v1566 = vadd.f32 %v489, %v1565
        %1567 = vmatprep.mubr.bf16.mxu0 0
        %1568 = vmatmul.mubr.bf16.gmra.mrb[0].mxu0 %v562
        %v1569 = vpop.f32.mrb[0].mxu0
        %v1570 = vadd.f32 %v494, %v1569
        %v1571 = vpop.f32.mrb[0].mxu0
        %v1572 = vadd.f32 %v494, %v1571
        %v1573 = vpop.f32.mrb[0].mxu0
        %v1574 = vadd.f32 %v499, %v1573
        %v1575 = vpop.f32.mrb[0].mxu0
        %v1576 = vadd.f32 %v499, %v1575
        %1577 = vmatprep.mubr.bf16.mxu0 0
        %1578 = vmatmul.mubr.bf16.gmra.mrb[0].mxu0 %v565
        %v1579 = vpop.f32.mrb[0].mxu0
        %v1580 = vadd.f32 %v504, %v1579
        %v1581 = vpop.f32.mrb[0].mxu0
        %v1582 = vadd.f32 %v504, %v1581
        %v1583 = vpop.f32.mrb[0].mxu0
        %v1584 = vadd.f32 %v509, %v1583
        %v1585 = vpop.f32.mrb[0].mxu0
        %v1586 = vadd.f32 %v509, %v1585
        %1587 = vmatprep.mubr.bf16.mxu0 0
        %1588 = vmatmul.mubr.bf16.gmra.mrb[0].mxu0 %v568
        %v1589 = vpop.f32.mrb[0].mxu0
        %v1590 = vadd.f32 %v514, %v1589
        %v1591 = vpop.f32.mrb[0].mxu0
        %v1592 = vadd.f32 %v514, %v1591
        %v1593 = vpop.f32.mrb[0].mxu0
        %v1594 = vadd.f32 %v519, %v1593
        %v1595 = vpop.f32.mrb[0].mxu0
        %v1596 = vadd.f32 %v519, %v1595
        %1597 = vdwg.mxu0
        %v1598 = vmax.f32 %v1540, 0.0
        %v1599 = vmax.f32 %v1542, 0.0
        %v1600 = vmax.f32 %v1544, 0.0
        %v1601 = vmax.f32 %v1546, 0.0
        %v1602 = vmax.f32 %v1550, 0.0
        %v1603 = vmax.f32 %v1552, 0.0
        %v1604 = vmax.f32 %v1554, 0.0
        %v1605 = vmax.f32 %v1556, 0.0
        %v1606 = vmax.f32 %v1560, 0.0
        %v1607 = vmax.f32 %v1562, 0.0
        %v1608 = vmax.f32 %v1564, 0.0
        %v1609 = vmax.f32 %v1566, 0.0
        %v1610 = vmax.f32 %v1570, 0.0
        %v1611 = vmax.f32 %v1572, 0.0
        %v1612 = vmax.f32 %v1574, 0.0
        %v1613 = vmax.f32 %v1576, 0.0
        %v1614 = vmax.f32 %v1580, 0.0
        %v1615 = vmax.f32 %v1582, 0.0
        %v1616 = vmax.f32 %v1584, 0.0
        %v1617 = vmax.f32 %v1586, 0.0
        %v1618 = vmax.f32 %v1590, 0.0
        %v1619 = vmax.f32 %v1592, 0.0
        %v1620 = vmax.f32 %v1594, 0.0
        %v1621 = vmax.f32 %v1596, 0.0
        %v1622 = vpack.c.bf16 %v1600, %v1598
        %v1623 = vpack.c.bf16 %v1601, %v1599
        %v1624 = vpack.c.bf16 %v1604, %v1602
        %v1625 = vpack.c.bf16 %v1605, %v1603
        %v1626 = vpack.c.bf16 %v1608, %v1606
        %v1627 = vpack.c.bf16 %v1609, %v1607
        %v1628 = vpack.c.bf16 %v1612, %v1610
        %v1629 = vpack.c.bf16 %v1613, %v1611
        %v1630 = vpack.c.bf16 %v1616, %v1614
        %v1631 = vpack.c.bf16 %v1617, %v1615
        %v1632 = vpack.c.bf16 %v1620, %v1618
        %v1633 = vpack.c.bf16 %v1621, %v1619
        %1634 = vmatprep.subr.bf16.mxu0 %v1623
        %1635 = vmatpush1.bf16.msra.mxu0 %v1622
        %1636 = vmatprep.subr.bf16.mxu0 %v1625
        %1637 = vmatpush1.bf16.msra.mxu0 %v1624
        %1638 = vmatprep.subr.bf16.mxu0 %v1627
        %1639 = vmatpush1.bf16.msra.mxu0 %v1626
        %1640 = vmatprep.subr.bf16.mxu0 %v1629
        %1641 = vmatpush1.bf16.msra.mxu0 %v1628
        %1642 = vmatprep.subr.bf16.mxu0 %v1631
        %1643 = vmatpush1.bf16.msra.mxu0 %v1630
        %1644 = vmatprep.subr.bf16.mxu0 %v1633
        %1645 = vmatpush1.bf16.msra.mxu0 %v1632
        %1646 = vmatprep.subr.bf16.mxu0 0
        %1647 = vmatpush1.bf16.msra.mxu0 0
        %1648 = vmatprep.subr.bf16.mxu0 0
        %1649 = vmatpush1.bf16.msra.mxu0 0
        %1650 = vmatprep.subr.bf16.mxu0 0
        %1651 = vmatpush1.bf16.msra.mxu0 0
        %1652 = vmatprep.subr.bf16.mxu0 0
        %1653 = vmatpush1.bf16.msra.mxu0 0
        %1654 = vmatprep.subr.bf16.mxu0 0
        %1655 = vmatpush1.bf16.msra.mxu0 0
        %1656 = vmatprep.subr.bf16.mxu0 0
        %1657 = vmatpush1.bf16.msra.mxu0 0
        %1658 = vmatprep.subr.bf16.mxu0 0
        %1659 = vmatpush1.bf16.msra.mxu0 0
        %1660 = vmatprep.subr.bf16.mxu0 0
        %1661 = vmatpush1.bf16.msra.mxu0 0
        %1662 = vmatprep.subr.bf16.mxu0 0
        %1663 = vmatpush1.bf16.msra.mxu0 0
        %1664 = vmatprep.subr.bf16.mxu0 0
        %1665 = vmatpush1.bf16.msra.mxu0 0
        %1666 = vmatprep.mubr.bf16.mxu0 0
        %1667 = vmatmul.mubr.bf16.gmra.mrb[0].mxu0 %v761
        %v1668 = vpop.f32.mrb[0].mxu0
        %v1669 = vadd.f32 %v702, %v1668
        %v1670 = vpop.f32.mrb[0].mxu0
        %v1671 = vadd.f32 %v702, %v1670
        %v1672 = vpop.f32.mrb[0].mxu0
        %v1673 = vadd.f32 %v707, %v1672
        %v1674 = vpop.f32.mrb[0].mxu0
        %v1675 = vadd.f32 %v707, %v1674
        %1676 = vmatprep.mubr.bf16.mxu0 0
        %1677 = vmatmul.mubr.bf16.gmra.mrb[0].mxu0 %v764
        %v1678 = vpop.f32.mrb[0].mxu0
        %v1679 = vadd.f32 %v712, %v1678
        %v1680 = vpop.f32.mrb[0].mxu0
        %v1681 = vadd.f32 %v712, %v1680
        %v1682 = vpop.f32.mrb[0].mxu0
        %v1683 = vadd.f32 %v717, %v1682
        %v1684 = vpop.f32.mrb[0].mxu0
        %v1685 = vadd.f32 %v717, %v1684
        %1686 = vmatprep.mubr.bf16.mxu0 0
        %1687 = vmatmul.mubr.bf16.gmra.mrb[0].mxu0 %v767
        %v1688 = vpop.f32.mrb[0].mxu0
        %v1689 = vadd.f32 %v722, %v1688
        %v1690 = vpop.f32.mrb[0].mxu0
        %v1691 = vadd.f32 %v722, %v1690
        %v1692 = vpop.f32.mrb[0].mxu0
        %v1693 = vadd.f32 %v727, %v1692
        %v1694 = vpop.f32.mrb[0].mxu0
        %v1695 = vadd.f32 %v727, %v1694
        %1696 = vmatprep.mubr.bf16.mxu0 0
        %1697 = vmatmul.mubr.bf16.gmra.mrb[0].mxu0 %v770
        %v1698 = vpop.f32.mrb[0].mxu0
        %v1699 = vadd.f32 %v732, %v1698
        %v1700 = vpop.f32.mrb[0].mxu0
        %v1701 = vadd.f32 %v732, %v1700
        %v1702 = vpop.f32.mrb[0].mxu0
        %v1703 = vadd.f32 %v737, %v1702
        %v1704 = vpop.f32.mrb[0].mxu0
        %v1705 = vadd.f32 %v737, %v1704
        %1706 = vdwg.mxu0
        %v1707 = vmax.f32 %v1669, 0.0
        %v1708 = vmax.f32 %v1671, 0.0
        %v1709 = vmax.f32 %v1673, 0.0
        %v1710 = vmax.f32 %v1675, 0.0
        %v1711 = vmax.f32 %v1679, 0.0
        %v1712 = vmax.f32 %v1681, 0.0
        %v1713 = vmax.f32 %v1683, 0.0
        %v1714 = vmax.f32 %v1685, 0.0
        %v1715 = vmax.f32 %v1689, 0.0
        %v1716 = vmax.f32 %v1691, 0.0
        %v1717 = vmax.f32 %v1693, 0.0
        %v1718 = vmax.f32 %v1695, 0.0
        %v1719 = vmax.f32 %v1699, 0.0
        %v1720 = vmax.f32 %v1701, 0.0
        %v1721 = vmax.f32 %v1703, 0.0
        %v1722 = vmax.f32 %v1705, 0.0
        %v1723 = vpack.c.bf16 %v1709, %v1707
        %v1724 = vpack.c.bf16 %v1710, %v1708
        %v1725 = vpack.c.bf16 %v1713, %v1711
        %v1726 = vpack.c.bf16 %v1714, %v1712
        %v1727 = vpack.c.bf16 %v1717, %v1715
        %v1728 = vpack.c.bf16 %v1718, %v1716
        %v1729 = vpack.c.bf16 %v1721, %v1719
        %v1730 = vpack.c.bf16 %v1722, %v1720
        %1731 = vmatprep.subr.bf16.mxu0 %v1724
        %1732 = vmatpush1.bf16.msra.mxu0 %v1723
        %1733 = vmatprep.subr.bf16.mxu0 %v1726
        %1734 = vmatpush1.bf16.msra.mxu0 %v1725
        %1735 = vmatprep.subr.bf16.mxu0 %v1728
        %1736 = vmatpush1.bf16.msra.mxu0 %v1727
        %1737 = vmatprep.subr.bf16.mxu0 %v1730
        %1738 = vmatpush1.bf16.msra.mxu0 %v1729
        %1739 = vmatprep.subr.bf16.mxu0 0
        %1740 = vmatpush1.bf16.msra.mxu0 0
        %1741 = vmatprep.subr.bf16.mxu0 0
        %1742 = vmatpush1.bf16.msra.mxu0 0
        %1743 = vmatprep.subr.bf16.mxu0 0
        %1744 = vmatpush1.bf16.msra.mxu0 0
        %1745 = vmatprep.subr.bf16.mxu0 0
        %1746 = vmatpush1.bf16.msra.mxu0 0
        %1747 = vmatprep.subr.bf16.mxu0 0
        %1748 = vmatpush1.bf16.msra.mxu0 0
        %1749 = vmatprep.subr.bf16.mxu0 0
        %1750 = vmatpush1.bf16.msra.mxu0 0
        %1751 = vmatprep.subr.bf16.mxu0 0
        %1752 = vmatpush1.bf16.msra.mxu0 0
        %1753 = vmatprep.subr.bf16.mxu0 0
        %1754 = vmatpush1.bf16.msra.mxu0 0
        %1755 = vmatprep.subr.bf16.mxu0 0
        %1756 = vmatpush1.bf16.msra.mxu0 0
        %1757 = vmatprep.subr.bf16.mxu0 0
        %1758 = vmatpush1.bf16.msra.mxu0 0
        %1759 = vmatprep.subr.bf16.mxu0 0
        %1760 = vmatpush1.bf16.msra.mxu0 0
        %1761 = vmatprep.subr.bf16.mxu0 0
        %1762 = vmatpush1.bf16.msra.mxu0 0
        %1763 = vmatprep.mubr.bf16.mxu0 0
        %1764 = vmatmul.mubr.bf16.gmra.mrb[0].mxu0 %v876
        %v1765 = vpop.f32.mrb[0].mxu0
        %v1766 = vadd.f32 %v872, %v1765
        %v1767 = vpop.f32.mrb[0].mxu0
        %v1768 = vadd.f32 %v872, %v1767
        %v1769 = vpop.f32.mrb[0].mxu0
        %v1770 = vpop.f32.mrb[0].mxu0
        %1771 = vdwg.mxu0
        %v1774 = vcombine.low %v1766, %v1768
        %v1776 = vunpack.c.l.s4 1983009808
        %v1777 = vunpack.c.0.s8 %v1776
        %v1778 = vlaneseq
        %v1779 = vshrl.u32 %v1778, 7
        %v1780 = vsub.s32 %v1777, %v1779
        %v1781 = vrot.slane %v1774, %v1780
        %s1783 = scalar_lea.vmem %s164, 8 [#allocation2]
        %1784 = vst [vmem:[%s1783] sm:$0xf] %v1781
        %s1785 = scalar_lea.vmem %s169, 48
        %v1786 = vld [vmem:[%s1785] sm:$0x3f]
        %v1787 = vld [vmem:[%s1785 + $0x8] sm:$0x3f]
        %v1788 = vpack.c.bf16 %v1786, %v1786
        %v1789 = vpack.c.bf16 %v1787, %v1787
        %v1791 = vsel %vm262, %v1788, 0
        %v1794 = vsel %vm262, %v1789, 0
        %1796 = vmatprep.subr.bf16.mxu0 %v1794
        %1797 = vmatpush1.bf16.msra.mxu0 %v1791
        %1798 = vmatprep.subr.bf16.mxu0 0
        %1799 = vmatpush1.bf16.msra.mxu0 0
        %1800 = vmatprep.subr.bf16.mxu0 0
        %1801 = vmatpush1.bf16.msra.mxu0 0
        %1802 = vmatprep.subr.bf16.mxu0 0
        %1803 = vmatpush1.bf16.msra.mxu0 0
        %1804 = vmatprep.subr.bf16.mxu0 0
        %1805 = vmatpush1.bf16.msra.mxu0 0
        %1806 = vmatprep.subr.bf16.mxu0 0
        %1807 = vmatpush1.bf16.msra.mxu0 0
        %1808 = vmatprep.subr.bf16.mxu0 0
        %1809 = vmatpush1.bf16.msra.mxu0 0
        %1810 = vmatprep.subr.bf16.mxu0 0
        %1811 = vmatpush1.bf16.msra.mxu0 0
        %1812 = vmatprep.subr.bf16.mxu0 0
        %1813 = vmatpush1.bf16.msra.mxu0 0
        %1814 = vmatprep.subr.bf16.mxu0 0
        %1815 = vmatpush1.bf16.msra.mxu0 0
        %1816 = vmatprep.subr.bf16.mxu0 0
        %1817 = vmatpush1.bf16.msra.mxu0 0
        %1818 = vmatprep.subr.bf16.mxu0 0
        %1819 = vmatpush1.bf16.msra.mxu0 0
        %1820 = vmatprep.subr.bf16.mxu0 0
        %1821 = vmatpush1.bf16.msra.mxu0 0
        %1822 = vmatprep.subr.bf16.mxu0 0
        %1823 = vmatpush1.bf16.msra.mxu0 0
        %1824 = vmatprep.subr.bf16.mxu0 0
        %1825 = vmatpush1.bf16.msra.mxu0 0
        %1826 = vmatprep.subr.bf16.mxu0 0
        %1827 = vmatpush1.bf16.msra.mxu0 0
        %1828 = vmatprep.mubr.bf16.mxu0 0
        %1829 = vmatmul.mubr.bf16.gmra.mrb[0].mxu0 %v260
        %v1830 = vpop.f32.mrb[0].mxu0
        %v1831 = vadd.f32 %v246, %v1830
        %v1832 = vpop.f32.mrb[0].mxu0
        %v1833 = vadd.f32 %v246, %v1832
        %v1834 = vpop.f32.mrb[0].mxu0
        %v1835 = vadd.f32 %v251, %v1834
        %v1836 = vpop.f32.mrb[0].mxu0
        %v1837 = vadd.f32 %v251, %v1836
        %1838 = vdwg.mxu0
        %v1839 = vmax.f32 %v1831, 0.0
        %v1840 = vmax.f32 %v1833, 0.0
        %v1841 = vmax.f32 %v1835, 0.0
        %v1842 = vmax.f32 %v1837, 0.0
        %v1843 = vpack.c.bf16 %v1841, %v1839
        %v1844 = vpack.c.bf16 %v1842, %v1840
        %v1846 = vsel %vm373, %v1843, 0
        %v1849 = vsel %vm373, %v1844, 0
        %1851 = vmatprep.subr.bf16.mxu0 %v1849
        %1852 = vmatpush1.bf16.msra.mxu0 %v1846
        %1853 = vmatprep.subr.bf16.mxu0 0
        %1854 = vmatpush1.bf16.msra.mxu0 0
        %1855 = vmatprep.subr.bf16.mxu0 0
        %1856 = vmatpush1.bf16.msra.mxu0 0
        %1857 = vmatprep.subr.bf16.mxu0 0
        %1858 = vmatpush1.bf16.msra.mxu0 0
        %1859 = vmatprep.subr.bf16.mxu0 0
        %1860 = vmatpush1.bf16.msra.mxu0 0
        %1861 = vmatprep.subr.bf16.mxu0 0
        %1862 = vmatpush1.bf16.msra.mxu0 0
        %1863 = vmatprep.subr.bf16.mxu0 0
        %1864 = vmatpush1.bf16.msra.mxu0 0
        %1865 = vmatprep.subr.bf16.mxu0 0
        %1866 = vmatpush1.bf16.msra.mxu0 0
        %1867 = vmatprep.subr.bf16.mxu0 0
        %1868 = vmatpush1.bf16.msra.mxu0 0
        %1869 = vmatprep.subr.bf16.mxu0 0
        %1870 = vmatpush1.bf16.msra.mxu0 0
        %1871 = vmatprep.subr.bf16.mxu0 0
        %1872 = vmatpush1.bf16.msra.mxu0 0
        %1873 = vmatprep.subr.bf16.mxu0 0
        %1874 = vmatpush1.bf16.msra.mxu0 0
        %1875 = vmatprep.subr.bf16.mxu0 0
        %1876 = vmatpush1.bf16.msra.mxu0 0
        %1877 = vmatprep.subr.bf16.mxu0 0
        %1878 = vmatpush1.bf16.msra.mxu0 0
        %1879 = vmatprep.subr.bf16.mxu0 0
        %1880 = vmatpush1.bf16.msra.mxu0 0
        %1881 = vmatprep.subr.bf16.mxu0 0
        %1882 = vmatpush1.bf16.msra.mxu0 0
        %1883 = vmatprep.mubr.bf16.mxu0 0
        %1884 = vmatmul.mubr.bf16.gmra.mrb[0].mxu0 %v365
        %v1885 = vpop.f32.mrb[0].mxu0
        %v1886 = vadd.f32 %v321, %v1885
        %v1887 = vpop.f32.mrb[0].mxu0
        %v1888 = vadd.f32 %v321, %v1887
        %v1889 = vpop.f32.mrb[0].mxu0
        %v1890 = vadd.f32 %v326, %v1889
        %v1891 = vpop.f32.mrb[0].mxu0
        %v1892 = vadd.f32 %v326, %v1891
        %1893 = vmatprep.mubr.bf16.mxu0 0
        %1894 = vmatmul.mubr.bf16.gmra.mrb[0].mxu0 %v368
        %v1895 = vpop.f32.mrb[0].mxu0
        %v1896 = vadd.f32 %v331, %v1895
        %v1897 = vpop.f32.mrb[0].mxu0
        %v1898 = vadd.f32 %v331, %v1897
        %v1899 = vpop.f32.mrb[0].mxu0
        %v1900 = vadd.f32 %v336, %v1899
        %v1901 = vpop.f32.mrb[0].mxu0
        %v1902 = vadd.f32 %v336, %v1901
        %1903 = vmatprep.mubr.bf16.mxu0 0
        %1904 = vmatmul.mubr.bf16.gmra.mrb[0].mxu0 %v371
        %v1905 = vpop.f32.mrb[0].mxu0
        %v1906 = vadd.f32 %v341, %v1905
        %v1907 = vpop.f32.mrb[0].mxu0
        %v1908 = vadd.f32 %v341, %v1907
        %v1909 = vpop.f32.mrb[0].mxu0
        %v1910 = vadd.f32 %v346, %v1909
        %v1911 = vpop.f32.mrb[0].mxu0
        %v1912 = vadd.f32 %v346, %v1911
        %1913 = vdwg.mxu0
        %v1914 = vmax.f32 %v1886, 0.0
        %v1915 = vmax.f32 %v1888, 0.0
        %v1916 = vmax.f32 %v1890, 0.0
        %v1917 = vmax.f32 %v1892, 0.0
        %v1918 = vmax.f32 %v1896, 0.0
        %v1919 = vmax.f32 %v1898, 0.0
        %v1920 = vmax.f32 %v1900, 0.0
        %v1921 = vmax.f32 %v1902, 0.0
        %v1922 = vmax.f32 %v1906, 0.0
        %v1923 = vmax.f32 %v1908, 0.0
        %v1924 = vmax.f32 %v1910, 0.0
        %v1925 = vmax.f32 %v1912, 0.0
        %v1926 = vpack.c.bf16 %v1916, %v1914
        %v1927 = vpack.c.bf16 %v1917, %v1915
        %v1928 = vpack.c.bf16 %v1920, %v1918
        %v1929 = vpack.c.bf16 %v1921, %v1919
        %v1930 = vpack.c.bf16 %v1924, %v1922
        %v1931 = vpack.c.bf16 %v1925, %v1923
        %1932 = vmatprep.subr.bf16.mxu0 %v1927
        %1933 = vmatpush1.bf16.msra.mxu0 %v1926
        %1934 = vmatprep.subr.bf16.mxu0 %v1929
        %1935 = vmatpush1.bf16.msra.mxu0 %v1928
        %1936 = vmatprep.subr.bf16.mxu0 %v1931
        %1937 = vmatpush1.bf16.msra.mxu0 %v1930
        %1938 = vmatprep.subr.bf16.mxu0 0
        %1939 = vmatpush1.bf16.msra.mxu0 0
        %1940 = vmatprep.subr.bf16.mxu0 0
        %1941 = vmatpush1.bf16.msra.mxu0 0
        %1942 = vmatprep.subr.bf16.mxu0 0
        %1943 = vmatpush1.bf16.msra.mxu0 0
        %1944 = vmatprep.subr.bf16.mxu0 0
        %1945 = vmatpush1.bf16.msra.mxu0 0
        %1946 = vmatprep.subr.bf16.mxu0 0
        %1947 = vmatpush1.bf16.msra.mxu0 0
        %1948 = vmatprep.subr.bf16.mxu0 0
        %1949 = vmatpush1.bf16.msra.mxu0 0
        %1950 = vmatprep.subr.bf16.mxu0 0
        %1951 = vmatpush1.bf16.msra.mxu0 0
        %1952 = vmatprep.subr.bf16.mxu0 0
        %1953 = vmatpush1.bf16.msra.mxu0 0
        %1954 = vmatprep.subr.bf16.mxu0 0
        %1955 = vmatpush1.bf16.msra.mxu0 0
        %1956 = vmatprep.subr.bf16.mxu0 0
        %1957 = vmatpush1.bf16.msra.mxu0 0
        %1958 = vmatprep.subr.bf16.mxu0 0
        %1959 = vmatpush1.bf16.msra.mxu0 0
        %1960 = vmatprep.subr.bf16.mxu0 0
        %1961 = vmatpush1.bf16.msra.mxu0 0
        %1962 = vmatprep.subr.bf16.mxu0 0
        %1963 = vmatpush1.bf16.msra.mxu0 0
        %1964 = vmatprep.mubr.bf16.mxu0 0
        %1965 = vmatmul.mubr.bf16.gmra.mrb[0].mxu0 %v553
        %v1966 = vpop.f32.mrb[0].mxu0
        %v1967 = vadd.f32 %v464, %v1966
        %v1968 = vpop.f32.mrb[0].mxu0
        %v1969 = vadd.f32 %v464, %v1968
        %v1970 = vpop.f32.mrb[0].mxu0
        %v1971 = vadd.f32 %v469, %v1970
        %v1972 = vpop.f32.mrb[0].mxu0
        %v1973 = vadd.f32 %v469, %v1972
        %1974 = vmatprep.mubr.bf16.mxu0 0
        %1975 = vmatmul.mubr.bf16.gmra.mrb[0].mxu0 %v556
        %v1976 = vpop.f32.mrb[0].mxu0
        %v1977 = vadd.f32 %v474, %v1976
        %v1978 = vpop.f32.mrb[0].mxu0
        %v1979 = vadd.f32 %v474, %v1978
        %v1980 = vpop.f32.mrb[0].mxu0
        %v1981 = vadd.f32 %v479, %v1980
        %v1982 = vpop.f32.mrb[0].mxu0
        %v1983 = vadd.f32 %v479, %v1982
        %1984 = vmatprep.mubr.bf16.mxu0 0
        %1985 = vmatmul.mubr.bf16.gmra.mrb[0].mxu0 %v559
        %v1986 = vpop.f32.mrb[0].mxu0
        %v1987 = vadd.f32 %v484, %v1986
        %v1988 = vpop.f32.mrb[0].mxu0
        %v1989 = vadd.f32 %v484, %v1988
        %v1990 = vpop.f32.mrb[0].mxu0
        %v1991 = vadd.f32 %v489, %v1990
        %v1992 = vpop.f32.mrb[0].mxu0
        %v1993 = vadd.f32 %v489, %v1992
        %1994 = vmatprep.mubr.bf16.mxu0 0
        %1995 = vmatmul.mubr.bf16.gmra.mrb[0].mxu0 %v562
        %v1996 = vpop.f32.mrb[0].mxu0
        %v1997 = vadd.f32 %v494, %v1996
        %v1998 = vpop.f32.mrb[0].mxu0
        %v1999 = vadd.f32 %v494, %v1998
        %v2000 = vpop.f32.mrb[0].mxu0
        %v2001 = vadd.f32 %v499, %v2000
        %v2002 = vpop.f32.mrb[0].mxu0
        %v2003 = vadd.f32 %v499, %v2002
        %2004 = vmatprep.mubr.bf16.mxu0 0
        %2005 = vmatmul.mubr.bf16.gmra.mrb[0].mxu0 %v565
        %v2006 = vpop.f32.mrb[0].mxu0
        %v2007 = vadd.f32 %v504, %v2006
        %v2008 = vpop.f32.mrb[0].mxu0
        %v2009 = vadd.f32 %v504, %v2008
        %v2010 = vpop.f32.mrb[0].mxu0
        %v2011 = vadd.f32 %v509, %v2010
        %v2012 = vpop.f32.mrb[0].mxu0
        %v2013 = vadd.f32 %v509, %v2012
        %2014 = vmatprep.mubr.bf16.mxu0 0
        %2015 = vmatmul.mubr.bf16.gmra.mrb[0].mxu0 %v568
        %v2016 = vpop.f32.mrb[0].mxu0
        %v2017 = vadd.f32 %v514, %v2016
        %v2018 = vpop.f32.mrb[0].mxu0
        %v2019 = vadd.f32 %v514, %v2018
        %v2020 = vpop.f32.mrb[0].mxu0
        %v2021 = vadd.f32 %v519, %v2020
        %v2022 = vpop.f32.mrb[0].mxu0
        %v2023 = vadd.f32 %v519, %v2022
        %2024 = vdwg.mxu0
        %v2025 = vmax.f32 %v1967, 0.0
        %v2026 = vmax.f32 %v1969, 0.0
        %v2027 = vmax.f32 %v1971, 0.0
        %v2028 = vmax.f32 %v1973, 0.0
        %v2029 = vmax.f32 %v1977, 0.0
        %v2030 = vmax.f32 %v1979, 0.0
        %v2031 = vmax.f32 %v1981, 0.0
        %v2032 = vmax.f32 %v1983, 0.0
        %v2033 = vmax.f32 %v1987, 0.0
        %v2034 = vmax.f32 %v1989, 0.0
        %v2035 = vmax.f32 %v1991, 0.0
        %v2036 = vmax.f32 %v1993, 0.0
        %v2037 = vmax.f32 %v1997, 0.0
        %v2038 = vmax.f32 %v1999, 0.0
        %v2039 = vmax.f32 %v2001, 0.0
        %v2040 = vmax.f32 %v2003, 0.0
        %v2041 = vmax.f32 %v2007, 0.0
        %v2042 = vmax.f32 %v2009, 0.0
        %v2043 = vmax.f32 %v2011, 0.0
        %v2044 = vmax.f32 %v2013, 0.0
        %v2045 = vmax.f32 %v2017, 0.0
        %v2046 = vmax.f32 %v2019, 0.0
        %v2047 = vmax.f32 %v2021, 0.0
        %v2048 = vmax.f32 %v2023, 0.0
        %v2049 = vpack.c.bf16 %v2027, %v2025
        %v2050 = vpack.c.bf16 %v2028, %v2026
        %v2051 = vpack.c.bf16 %v2031, %v2029
        %v2052 = vpack.c.bf16 %v2032, %v2030
        %v2053 = vpack.c.bf16 %v2035, %v2033
        %v2054 = vpack.c.bf16 %v2036, %v2034
        %v2055 = vpack.c.bf16 %v2039, %v2037
        %v2056 = vpack.c.bf16 %v2040, %v2038
        %v2057 = vpack.c.bf16 %v2043, %v2041
        %v2058 = vpack.c.bf16 %v2044, %v2042
        %v2059 = vpack.c.bf16 %v2047, %v2045
        %v2060 = vpack.c.bf16 %v2048, %v2046
        %2061 = vmatprep.subr.bf16.mxu0 %v2050
        %2062 = vmatpush1.bf16.msra.mxu0 %v2049
        %2063 = vmatprep.subr.bf16.mxu0 %v2052
        %2064 = vmatpush1.bf16.msra.mxu0 %v2051
        %2065 = vmatprep.subr.bf16.mxu0 %v2054
        %2066 = vmatpush1.bf16.msra.mxu0 %v2053
        %2067 = vmatprep.subr.bf16.mxu0 %v2056
        %2068 = vmatpush1.bf16.msra.mxu0 %v2055
        %2069 = vmatprep.subr.bf16.mxu0 %v2058
        %2070 = vmatpush1.bf16.msra.mxu0 %v2057
        %2071 = vmatprep.subr.bf16.mxu0 %v2060
        %2072 = vmatpush1.bf16.msra.mxu0 %v2059
        %2073 = vmatprep.subr.bf16.mxu0 0
        %2074 = vmatpush1.bf16.msra.mxu0 0
        %2075 = vmatprep.subr.bf16.mxu0 0
        %2076 = vmatpush1.bf16.msra.mxu0 0
        %2077 = vmatprep.subr.bf16.mxu0 0
        %2078 = vmatpush1.bf16.msra.mxu0 0
        %2079 = vmatprep.subr.bf16.mxu0 0
        %2080 = vmatpush1.bf16.msra.mxu0 0
        %2081 = vmatprep.subr.bf16.mxu0 0
        %2082 = vmatpush1.bf16.msra.mxu0 0
        %2083 = vmatprep.subr.bf16.mxu0 0
        %2084 = vmatpush1.bf16.msra.mxu0 0
        %2085 = vmatprep.subr.bf16.mxu0 0
        %2086 = vmatpush1.bf16.msra.mxu0 0
        %2087 = vmatprep.subr.bf16.mxu0 0
        %2088 = vmatpush1.bf16.msra.mxu0 0
        %2089 = vmatprep.subr.bf16.mxu0 0
        %2090 = vmatpush1.bf16.msra.mxu0 0
        %2091 = vmatprep.subr.bf16.mxu0 0
        %2092 = vmatpush1.bf16.msra.mxu0 0
        %2093 = vmatprep.mubr.bf16.mxu0 0
        %2094 = vmatmul.mubr.bf16.gmra.mrb[0].mxu0 %v761
        %v2095 = vpop.f32.mrb[0].mxu0
        %v2096 = vadd.f32 %v702, %v2095
        %v2097 = vpop.f32.mrb[0].mxu0
        %v2098 = vadd.f32 %v702, %v2097
        %v2099 = vpop.f32.mrb[0].mxu0
        %v2100 = vadd.f32 %v707, %v2099
        %v2101 = vpop.f32.mrb[0].mxu0
        %v2102 = vadd.f32 %v707, %v2101
        %2103 = vmatprep.mubr.bf16.mxu0 0
        %2104 = vmatmul.mubr.bf16.gmra.mrb[0].mxu0 %v764
        %v2105 = vpop.f32.mrb[0].mxu0
        %v2106 = vadd.f32 %v712, %v2105
        %v2107 = vpop.f32.mrb[0].mxu0
        %v2108 = vadd.f32 %v712, %v2107
        %v2109 = vpop.f32.mrb[0].mxu0
        %v2110 = vadd.f32 %v717, %v2109
        %v2111 = vpop.f32.mrb[0].mxu0
        %v2112 = vadd.f32 %v717, %v2111
        %2113 = vmatprep.mubr.bf16.mxu0 0
        %2114 = vmatmul.mubr.bf16.gmra.mrb[0].mxu0 %v767
        %v2115 = vpop.f32.mrb[0].mxu0
        %v2116 = vadd.f32 %v722, %v2115
        %v2117 = vpop.f32.mrb[0].mxu0
        %v2118 = vadd.f32 %v722, %v2117
        %v2119 = vpop.f32.mrb[0].mxu0
        %v2120 = vadd.f32 %v727, %v2119
        %v2121 = vpop.f32.mrb[0].mxu0
        %v2122 = vadd.f32 %v727, %v2121
        %2123 = vmatprep.mubr.bf16.mxu0 0
        %2124 = vmatmul.mubr.bf16.gmra.mrb[0].mxu0 %v770
        %v2125 = vpop.f32.mrb[0].mxu0
        %v2126 = vadd.f32 %v732, %v2125
        %v2127 = vpop.f32.mrb[0].mxu0
        %v2128 = vadd.f32 %v732, %v2127
        %v2129 = vpop.f32.mrb[0].mxu0
        %v2130 = vadd.f32 %v737, %v2129
        %v2131 = vpop.f32.mrb[0].mxu0
        %v2132 = vadd.f32 %v737, %v2131
        %2133 = vdwg.mxu0
        %v2134 = vmax.f32 %v2096, 0.0
        %v2135 = vmax.f32 %v2098, 0.0
        %v2136 = vmax.f32 %v2100, 0.0
        %v2137 = vmax.f32 %v2102, 0.0
        %v2138 = vmax.f32 %v2106, 0.0
        %v2139 = vmax.f32 %v2108, 0.0
        %v2140 = vmax.f32 %v2110, 0.0
        %v2141 = vmax.f32 %v2112, 0.0
        %v2142 = vmax.f32 %v2116, 0.0
        %v2143 = vmax.f32 %v2118, 0.0
        %v2144 = vmax.f32 %v2120, 0.0
        %v2145 = vmax.f32 %v2122, 0.0
        %v2146 = vmax.f32 %v2126, 0.0
        %v2147 = vmax.f32 %v2128, 0.0
        %v2148 = vmax.f32 %v2130, 0.0
        %v2149 = vmax.f32 %v2132, 0.0
        %v2150 = vpack.c.bf16 %v2136, %v2134
        %v2151 = vpack.c.bf16 %v2137, %v2135
        %v2152 = vpack.c.bf16 %v2140, %v2138
        %v2153 = vpack.c.bf16 %v2141, %v2139
        %v2154 = vpack.c.bf16 %v2144, %v2142
        %v2155 = vpack.c.bf16 %v2145, %v2143
        %v2156 = vpack.c.bf16 %v2148, %v2146
        %v2157 = vpack.c.bf16 %v2149, %v2147
        %2158 = vmatprep.subr.bf16.mxu0 %v2151
        %2159 = vmatpush1.bf16.msra.mxu0 %v2150
        %2160 = vmatprep.subr.bf16.mxu0 %v2153
        %2161 = vmatpush1.bf16.msra.mxu0 %v2152
        %2162 = vmatprep.subr.bf16.mxu0 %v2155
        %2163 = vmatpush1.bf16.msra.mxu0 %v2154
        %2164 = vmatprep.subr.bf16.mxu0 %v2157
        %2165 = vmatpush1.bf16.msra.mxu0 %v2156
        %2166 = vmatprep.subr.bf16.mxu0 0
        %2167 = vmatpush1.bf16.msra.mxu0 0
        %2168 = vmatprep.subr.bf16.mxu0 0
        %2169 = vmatpush1.bf16.msra.mxu0 0
        %2170 = vmatprep.subr.bf16.mxu0 0
        %2171 = vmatpush1.bf16.msra.mxu0 0
        %2172 = vmatprep.subr.bf16.mxu0 0
        %2173 = vmatpush1.bf16.msra.mxu0 0
        %2174 = vmatprep.subr.bf16.mxu0 0
        %2175 = vmatpush1.bf16.msra.mxu0 0
        %2176 = vmatprep.subr.bf16.mxu0 0
        %2177 = vmatpush1.bf16.msra.mxu0 0
        %2178 = vmatprep.subr.bf16.mxu0 0
        %2179 = vmatpush1.bf16.msra.mxu0 0
        %2180 = vmatprep.subr.bf16.mxu0 0
        %2181 = vmatpush1.bf16.msra.mxu0 0
        %2182 = vmatprep.subr.bf16.mxu0 0
        %2183 = vmatpush1.bf16.msra.mxu0 0
        %2184 = vmatprep.subr.bf16.mxu0 0
        %2185 = vmatpush1.bf16.msra.mxu0 0
        %2186 = vmatprep.subr.bf16.mxu0 0
        %2187 = vmatpush1.bf16.msra.mxu0 0
        %2188 = vmatprep.subr.bf16.mxu0 0
        %2189 = vmatpush1.bf16.msra.mxu0 0
        %2190 = vmatprep.mubr.bf16.mxu0 0
        %2191 = vmatmul.mubr.bf16.gmra.mrb[0].mxu0 %v876
        %v2192 = vpop.f32.mrb[0].mxu0
        %v2193 = vadd.f32 %v872, %v2192
        %v2194 = vpop.f32.mrb[0].mxu0
        %v2195 = vadd.f32 %v872, %v2194
        %v2196 = vpop.f32.mrb[0].mxu0
        %v2197 = vpop.f32.mrb[0].mxu0
        %2198 = vdwg.mxu0
        %v2201 = vcombine.low %v2193, %v2195
        %v2203 = vunpack.c.l.s4 1983009808
        %v2204 = vunpack.c.0.s8 %v2203
        %v2205 = vlaneseq
        %v2206 = vshrl.u32 %v2205, 7
        %v2207 = vsub.s32 %v2204, %v2206
        %v2208 = vrot.slane %v2201, %v2207
        %s2210 = scalar_lea.vmem %s164, 12 [#allocation2]
        %2211 = vst [vmem:[%s2210] sm:$0xf] %v2208
        %s2212 = sand.u32 %s93, 1
        %s2213 = scalar_lea.sflag [#allocation3], %s2212
        %s2214 = sand.u32 %s93, 1
        %s2215 = smul.addr %s2214, 16
        %s2216 = scalar_lea.vmem [#allocation2], %s2215
        // Predicated region
        $region33: #{tpu_custom_call.1} parent=31 // pred_check
          %p2217 = pneg %p103
        $region34: #{tpu_custom_call.1} parent=31 // pred_check_branch
          %2219 = sbr.rel (%p2217) target = $region36
        $region35: #{tpu_custom_call.1} parent=31 // pred_region
          %s2220 = smul.u32 8, %s17
          %s2222 = ssub.s32 256, 256
          %2223 = vsyncadd %s2213, %s2222
          %s2224 = smul.addr %s2220, 32
          %s2225 = scalar_lea.hbm %s3, %s2224
          %s2227 = sshll.u32 %s2216, 4
          %s2228 = int_to_ptr.vmem [resolvable:$true] %s2227
          %2230 = dma.vmem_to_hbm [thread:$0]  %s2228, 256, %s2225, %s2213
        $region36: #{tpu_custom_call.1} parent=31 // pred_fallthru
          _
      $region32: #{tpu_custom_call.1} parent=5 // pred_fallthru
        _
      %p2231 = scmp.le.s32.totalorder 2, %s12
      // Predicated region
      $region37: #{tpu_custom_call.1} parent=5 // pred_check
        %p2232 = pneg %p2231
      $region38: #{tpu_custom_call.1} parent=5 // pred_check_branch
        %2234 = sbr.rel (%p2232) target = $region40
      $region39: #{tpu_custom_call.1} parent=5 // pred_region
        %s2235 = ssub.s32 %s12, 2
        // Predicated region
        $region41: #{tpu_custom_call.1} parent=39 // pred_check
          %p2236 = pneg %p109
        $region42: #{tpu_custom_call.1} parent=39 // pred_check_branch
          %2238 = sbr.rel (%p2236) target = $region44
        $region43: #{tpu_custom_call.1} parent=39 // pred_region
          %s2239 = sand.u32 %s94, 1
          %s2240 = scalar_lea.sflag [#allocation3], %s2239
          %s2241 = sand.u32 %s94, 1
          %s2242 = smul.addr %s2241, 16
          %s2243 = scalar_lea.vmem [#allocation2], %s2242
          %2244 = dma.done %s2240, 256
        $region44: #{tpu_custom_call.1} parent=39 // pred_fallthru
          _
      $region40: #{tpu_custom_call.1} parent=5 // pred_fallthru
        _
    $region6: #{tpu_custom_call.1} parent=1 // loop_footer
      %s16 = sadd.s32 1, %s12
    $region7: #{tpu_custom_call.1} parent=1 // loop_footer_branch
      %11 = sbr.rel target = $region3
    $region8: #{tpu_custom_call.1} parent=1 // loop_exit
      _
    %2245 = vsyncpa [#allocation3], 1
    %s2246 = scalar_lea.sflag [#allocation3], 1
    %2247 = vsyncpa %s2246, 1

</llo_original>
